<compile_context>
chip_gen: v5e
topology: v5e:2x2
jax: 0.10.0
libtpu: 0.0.40
codegen_flags: <defaults>
</compile_context>

<pallas_src>
import jax
import jax.numpy as jnp
import numpy as np
from jax.experimental import pallas as pl
from jax.experimental.pallas import tpu as pltpu

OPS = ("zero", "skip_connect", "conv_1x1")   # op index: 0=zero, 1=skip, 2=conv1x1
NUM_NODES = 4
NUM_INPUT_NODES = 2
NUM_CELLS = 2
REDUCTION_CELLS = (1,)
NUM_CHANNELS = 8
IN_CHANNELS = 3
NUM_CLASSES = 10

CPAD = 128                       # channel lanes padded to one full vreg lane width
KSTEM = 9 * IN_CHANNELS          # 27
KSTEM_PAD = 32                   # padded stem contraction dim
ONES_COL = KSTEM                 # padded patch column permanently set to 1.0
ONES_LANE = CPAD - 1             # lane 127 of every activation buffer holds 1.0

# Activation-lane map of the shared per-image (HW,128) scratch (stem + cell 0):
#   [0:8) stem   [8:16) c0 node0   [16:24) c0 node1
#   [24:32) c0 node2   [32:40) c0 node3   lane 127 = ones
# Cell-1 buffer (the output block doubles as it):
#   [0:16) c1 node0  [16:32) c1 node1  [32:48) c1 node2  [48:64) c1 node3
C0_BASE = NUM_CHANNELS           # first cell-0 node lane offset


# ------------------------------ Pallas kernel -------------------------------

def _darts_fused_kernel(xcol_ref, wstem_ref, wsq_ref, out_ref, act_ref):
    """One image per grid step; every op is an MXU matmul on bf16 operands with
    f32 accumulation kept in VMEM.

    xcol_ref : (HW, 32)    bf16  im2col 3x3 patches, rows reordered so the
                                 ::2,::2 pixels come first; col 27 == 1.0.
    wstem_ref: (32, 128)   bf16  stem weight (+ bias row, ones-lane seed).
    wsq_ref  : (7,128,128) bf16  block-packed 1x1 weights (see _pack_operands).
    out_ref  : (P1, 128)   f32   doubles as the cell-1 activation buffer; after
                                 the last matmul lanes [0:10) are the logits.
    act_ref  : (HW, 128)   f32   scratch: stem + cell-0 nodes at disjoint lanes.
    """
    def bdot(a, w):
        return jnp.dot(a.astype(jnp.bfloat16), w,
                       preferred_element_type=jnp.float32)

    # stem: 3x3 conv (stride 1, pad 1) == one matmul over im2col patches.
    # Full overwrite also seeds lane 127 with 1.0 (bias/ones lane).
    act_ref[...] = jnp.dot(xcol_ref[...], wstem_ref[...],
                           preferred_element_type=jnp.float32)

    # ---- cell 0 (normal): each node is ONE wide-K matmul into disjoint lanes,
    # accumulated straight into the shared activation buffer (the dot result is
    # zero on already-populated lanes, so the += preserves them).
    act_ref[...] += bdot(act_ref[...], wsq_ref[0])   # input nodes 0,1 -> [8:24)
    act_ref[...] += bdot(act_ref[...], wsq_ref[1])   # node 2          -> [24:32)
    act_ref[...] += bdot(act_ref[...], wsq_ref[2])   # node 3          -> [32:40)

    # ---- cell 1 (reduction): the ::2,::2 subsample is just rows [0:P1) of the
    # activation buffer (host reordered the pixel rows) -> no gather, no
    # one-hot matmul.  W1_pre reads the stem lanes and cell-0-concat lanes.
    red = act_ref[0:out_ref.shape[0], :]
    out_ref[...] = bdot(red, wsq_ref[3])             # input nodes 0,1 -> [0:32)
    out_ref[...] += bdot(out_ref[...], wsq_ref[4])   # node 2          -> [32:48)
    out_ref[...] += bdot(out_ref[...], wsq_ref[5])   # node 3          -> [48:64)

    # last 1x1 conv -> logits in lanes [0:NUM_CLASSES), lane-dense 128-wide store
    out_ref[...] = bdot(out_ref[...], wsq_ref[6])


# ------------------------- operand packing (host side) ----------------------

def _pack_operands(params):
    """Fold DARTS edge/node softmax scales, skip-connect identities, concat lane
    offsets and ALL biases (via the propagated ones-lane) into seven zero-padded
    128x128 bf16 weights so the kernel is a pure chain of MXU matmuls.

    wsq order: [c0 pre01, c0 node2, c0 node3, c1 pre01, c1 node2, c1 node3, last]
    Run once per parameter update (host prep, not per forward call).
    """
    f32 = jnp.float32
    cells, arch = params["cells"], params["arch"]

    wstem = jnp.zeros((KSTEM_PAD, CPAD), f32)
    wstem = wstem.at[:KSTEM, :NUM_CHANNELS].set(params["first_conv"]["w"])
    wstem = wstem.at[ONES_COL, :NUM_CHANNELS].set(params["first_conv"]["b"])
    wstem = wstem.at[ONES_COL, ONES_LANE].set(1.0)          # seed the ones lane

    def node_weight(cell, a, n, src_off, dst_off, c):
        """128x128 weight computing intermediate node n of a cell as ONE matmul."""
        w = jnp.zeros((CPAD, CPAD), f32)
        node_w = jax.nn.softmax(a["node"][n])               # over predecessors
        diag = jnp.arange(c)
        for m in range(n):
            op_w = jax.nn.softmax(a["edge"][(m, n)])        # (zero, skip, conv)
            s_skip, s_conv = node_w[m] * op_w[1], node_w[m] * op_w[2]
            so = src_off(m)
            w = w.at[so:so + c, dst_off:dst_off + c].add(
                s_conv * cell["edges"][(m, n)]["w"])
            # skip_connect: scaled identity restricted to the REAL channel range
            # (never touches the ones lane or zero-padded lanes).
            w = w.at[so + diag, dst_off + diag].add(s_skip)
            w = w.at[ONES_LANE, dst_off:dst_off + c].add(
                s_conv * cell["edges"][(m, n)]["b"])
        return w

    # --------------------------- cell 0 (normal, c=8) ------------------------
    c0, a0 = cells[0], arch["normal"]
    c = c0["channels"]
    c0_off = lambda m: C0_BASE + c * m
    w0_pre = jnp.zeros((CPAD, CPAD), f32)
    for m in range(NUM_INPUT_NODES):                  # both input nodes read stem
        w0_pre = w0_pre.at[:NUM_CHANNELS,
                           c0_off(m):c0_off(m) + c].set(c0["pre"][m]["w"])
        w0_pre = w0_pre.at[ONES_LANE,
                           c0_off(m):c0_off(m) + c].set(c0["pre"][m]["b"])
    w0_n2 = node_weight(c0, a0, 2, c0_off, c0_off(2), c)
    w0_n3 = node_weight(c0, a0, 3, c0_off, c0_off(3), c)

    # ------------------------- cell 1 (reduction, c=16) ----------------------
    c1, a1 = cells[1], arch["reduction"]
    cc = c1["channels"]
    c1_off = lambda m: cc * m
    cell0_out_off = c0_off(NUM_INPUT_NODES)                  # lanes [24:40)
    cell0_out_c = c * (NUM_NODES - NUM_INPUT_NODES)          # 16
    w1_pre = jnp.zeros((CPAD, CPAD), f32)
    w1_pre = w1_pre.at[:NUM_CHANNELS, 0:cc].set(c1["pre"][0]["w"])      # stem
    w1_pre = w1_pre.at[ONES_LANE, 0:cc].set(c1["pre"][0]["b"])
    w1_pre = w1_pre.at[cell0_out_off:cell0_out_off + cell0_out_c,
                       cc:2 * cc].set(c1["pre"][1]["w"])                # cell-0 out
    w1_pre = w1_pre.at[ONES_LANE, cc:2 * cc].set(c1["pre"][1]["b"])
    w1_pre = w1_pre.at[ONES_LANE, ONES_LANE].set(1.0)   # carry ones into c1 buf
    w1_n2 = node_weight(c1, a1, 2, c1_off, c1_off(2), cc)
    w1_n3 = node_weight(c1, a1, 3, c1_off, c1_off(3), cc)

    # -------------------------------- last conv ------------------------------
    w_last = jnp.zeros((CPAD, CPAD), f32)
    lo = c1_off(NUM_INPUT_NODES)                             # lanes [32:64)
    w_last = w_last.at[lo:lo + 2 * cc, :NUM_CLASSES].set(params["last_conv"]["w"])
    w_last = w_last.at[ONES_LANE, :NUM_CLASSES].set(params["last_conv"]["b"])

    wsq = jnp.stack([w0_pre, w0_n2, w0_n3, w1_pre, w1_n2, w1_n3, w_last])
    return wstem.astype(jnp.bfloat16), wsq.astype(jnp.bfloat16)


def im2col3x3(x):
    """x: (N,H,W,C) -> (N,H,W,9*C), 3x3 patches with padding=1, stride=1."""
    n, h, w, c = x.shape
    xp = jnp.pad(x, ((0, 0), (1, 1), (1, 1), (0, 0)))
    cols = [xp[:, dh:dh + h, dw:dw + w, :] for dh in range(3) for dw in range(3)]
    return jnp.concatenate(cols, axis=-1)


# ------------------------------ forward passes -------------------------------

def forward_pallas(packed, x_nchw):
    wstem, wsq = packed
    x = jnp.transpose(x_nchw, (0, 2, 3, 1)).astype(jnp.float32)    # NCHW -> NHWC
    n_b, h0, w0, _ = x.shape
    assert h0 % 2 == 0 and w0 % 2 == 0, "even spatial dims required"
    hw = h0 * w0
    p1 = (h0 // 2) * (w0 // 2)
    assert hw % 8 == 0 and p1 % 8 == 0, "sublane-aligned row counts required"

    # im2col, then reorder rows per image so the (h%2==0, w%2==0) pixels occupy
    # rows [0:p1) in natural reduced NHWC order: the reduction-cell subsample
    # becomes a contiguous static slice inside the kernel.
    patches = im2col3x3(x)                                         # (N,H,W,27)
    patches = patches.reshape(n_b, h0 // 2, 2, w0 // 2, 2, KSTEM)
    patches = patches.transpose(0, 2, 4, 1, 3, 5).reshape(n_b, hw, KSTEM)
    xcol = jnp.zeros((n_b, hw, KSTEM_PAD), jnp.float32)
    xcol = xcol.at[..., :KSTEM].set(patches)
    xcol = xcol.at[..., ONES_COL].set(1.0)                         # bias/ones col
    xcol = xcol.astype(jnp.bfloat16)

    out = pl.pallas_call(
        _darts_fused_kernel,
        out_shape=jax.ShapeDtypeStruct((n_b, p1, CPAD), jnp.float32),
        grid=(n_b,),
        in_specs=[
            pl.BlockSpec((None, hw, KSTEM_PAD), lambda b: (b, 0, 0)),
            pl.BlockSpec((KSTEM_PAD, CPAD), lambda b: (0, 0)),
            pl.BlockSpec((wsq.shape[0], CPAD, CPAD), lambda b: (0, 0, 0)),
        ],
        out_specs=pl.BlockSpec((None, p1, CPAD), lambda b: (b, 0, 0)),
        scratch_shapes=[pltpu.VMEM((hw, CPAD), jnp.float32)],
        compiler_params=pltpu.CompilerParams(
            dimension_semantics=("parallel",),     # batch -> 2nd TC on v7x
            vmem_limit_bytes=8 * 1024 * 1024),     # actual footprint < 1 MiB
    )(xcol, wstem, wsq)

    logits = out[:, :, :NUM_CLASSES].reshape(n_b, h0 // 2, w0 // 2, NUM_CLASSES)
    return jnp.transpose(logits, (0, 3, 1, 2))                     # -> NCHW


# pure-JAX reference (ground truth, HIGHEST precision)

def _mm_ref(x, w, b):
    return jnp.dot(x, w, precision=jax.lax.Precision.HIGHEST) + b


def _node_ref(h_stack, w_stack, b_stack, scales):
    conv = jnp.einsum("mpc,mcd->mpd", h_stack, w_stack,
                      precision=jax.lax.Precision.HIGHEST) + b_stack
    return jnp.sum(scales[:, 0][:, None, None] * h_stack
                   + scales[:, 1][:, None, None] * conv, axis=0)


def forward_reference(params, x_nchw):
    x = jnp.transpose(x_nchw, (0, 2, 3, 1)).astype(jnp.float32)
    n_b, h0, w0, _ = x.shape
    patches = im2col3x3(x).reshape(n_b * h0 * w0, -1)
    h = _mm_ref(patches, params["first_conv"]["w"],
                params["first_conv"]["b"]).reshape(n_b, h0, w0, NUM_CHANNELS)
    cell_outputs = [h] * NUM_INPUT_NODES
    cell_out = h
    for cell in params["cells"]:
        reduction = cell["reduction"]
        a = params["arch"]["reduction" if reduction else "normal"]
        c = cell["channels"]
        node_outputs = {}
        for n in range(NUM_INPUT_NODES):
            src = cell_outputs[n - NUM_INPUT_NODES]
            if reduction:
                src = src[:, ::2, ::2, :]
            nb, hc, wc, cin = src.shape
            pre = cell["pre"][n]
            node_outputs[n] = _mm_ref(src.reshape(-1, cin), pre["w"],
                                      pre["b"]).reshape(nb, hc, wc, c)
        hc, wc = node_outputs[0].shape[1:3]
        p = n_b * hc * wc
        for n in range(NUM_INPUT_NODES, NUM_NODES):
            node_w = jax.nn.softmax(a["node"][n])
            h_stack = jnp.stack([node_outputs[m].reshape(p, c) for m in range(n)])
            w_stack = jnp.stack([cell["edges"][(m, n)]["w"] for m in range(n)])
            b_stack = jnp.stack([cell["edges"][(m, n)]["b"].reshape(1, c)
                                 for m in range(n)])
            op_w = jnp.stack([jax.nn.softmax(a["edge"][(m, n)]) for m in range(n)])
            scales = node_w[:, None] * op_w[:, 1:3]     # (zero, skip, conv) -> skip/conv
            node_outputs[n] = _node_ref(h_stack, w_stack, b_stack,
                                        scales).reshape(n_b, hc, wc, c)
        cell_out = jnp.concatenate(
            [node_outputs[n] for n in range(NUM_INPUT_NODES, NUM_NODES)], axis=-1)
        cell_outputs.append(cell_out)
    nb, hc, wc, cf = cell_out.shape
    out = _mm_ref(cell_out.reshape(-1, cf), params["last_conv"]["w"],
                  params["last_conv"]["b"]).reshape(nb, hc, wc, NUM_CLASSES)
    return jnp.transpose(out, (0, 3, 1, 2))


# --------------------------------- params -----------------------------------

def init_params(key):
    keys = iter(jax.random.split(key, 128))

    def w(shape):
        return 0.1 * jax.random.normal(next(keys), shape, jnp.float32)

    params = {"first_conv": {"w": w((9 * IN_CHANNELS, NUM_CHANNELS)),
                             "b": w((NUM_CHANNELS,))}}

    # Architecture logits (shared across cells of the same kind) — zeros, as in
    # nn.Parameter(torch.zeros(...)) in build_continuous_architecture.
    arch = {}
    for kind in ("normal", "reduction"):
        edge, node = {}, {}
        for n in range(NUM_INPUT_NODES, NUM_NODES):
            node[n] = jnp.zeros((n,), jnp.float32)            # over predecessors
            for m in range(n):
                edge[(m, n)] = jnp.zeros((len(OPS),), jnp.float32)
        arch[kind] = {"edge": edge, "node": node}
    params["arch"] = arch

    cells = []
    c_pp = c_p = NUM_CHANNELS
    c_cur = NUM_CHANNELS
    for i in range(NUM_CELLS):
        reduction = i in REDUCTION_CELLS
        if reduction:
            c_cur *= 2
        cell = {"reduction": reduction, "channels": c_cur,
                "pre": [{"w": w((c_pp, c_cur)), "b": w((c_cur,))},
                        {"w": w((c_p, c_cur)), "b": w((c_cur,))}],
                "edges": {}}
        for n in range(NUM_INPUT_NODES, NUM_NODES):
            for m in range(n):
                cell["edges"][(m, n)] = {"w": w((c_cur, c_cur)),
                                         "b": w((c_cur,))}
        cells.append(cell)
        c_pp, c_p = c_p, c_cur * (NUM_NODES - NUM_INPUT_NODES)
    params["cells"] = cells
    params["last_conv"] = {"w": w((c_p, NUM_CLASSES)), "b": w((NUM_CLASSES,))}
    return params

# TODO(synk): ScheduledDropPath / ScheduledGumbelSoftmax schedules, the
# acceleration/discrete forward branches, and graphviz rendering are training/
# search machinery outside the continuous forward hot path and are not ported.


if __name__ == "__main__":
    key = jax.random.PRNGKey(0)
    kp, kx = jax.random.split(key)
    params = init_params(kp)
    x = jax.random.normal(kx, (2, IN_CHANNELS, 16, 16), jnp.float32)  # NCHW

    packed = _pack_operands(params)          # host prep: once per param update
    forward = jax.jit(forward_pallas)
    y = jax.block_until_ready(forward(packed, x))

    # sanity: shape (reduction cell halves spatial dims), finiteness, ref match
    assert y.shape == (2, NUM_CLASSES, 8, 8), y.shape
    assert bool(jnp.all(jnp.isfinite(y)))
    y_ref = forward_reference(params, x)
    # tolerance sized for bf16 MXU operands (f32 accumulation) vs HIGHEST ref
    np.testing.assert_allclose(np.asarray(y), np.asarray(y_ref),
                               rtol=2e-2, atol=2e-2)
    print("KERNEL_OK")
</pallas_src>

<mosaic_0001>
module attributes {stable_mosaic.version = 11 : i64} {
  func.func @_darts_fused_kernel(%arg0: i32, %arg1: memref<1x256x32xbf16, #tpu.memory_space<vmem>>, %arg2: memref<32x128xbf16, #tpu.memory_space<vmem>>, %arg3: memref<7x128x128xbf16, #tpu.memory_space<vmem>>, %arg4: memref<1x64x128xf32, #tpu.memory_space<vmem>>, %arg5: memref<256x128xf32, #tpu.memory_space<vmem>>) attributes {dimension_semantics = [#tpu.dimension_semantics<parallel>], iteration_bounds = array<i64: 2>, scalar_prefetch = 0 : i64, scratch_operands = 1 : i64, tpu.core_type = #tpu.core_type<tc>, window_params = [{transform_indices = @transform_0, window_bounds = array<i64: 1, 256, 32>}, {pipeline_mode = #tpu.pipeline_mode<synchronous>, transform_indices = @transform_1, window_bounds = array<i64: 32, 128>}, {pipeline_mode = #tpu.pipeline_mode<synchronous>, transform_indices = @transform_2, window_bounds = array<i64: 7, 128, 128>}, {transform_indices = @transform_3, window_bounds = array<i64: 1, 64, 128>}]} {
    %c0 = arith.constant 0 : index
    %c0_0 = arith.constant 0 : index
    %c0_1 = arith.constant 0 : index
    %0 = vector.load %arg1[%c0, %c0_0, %c0_1] : memref<1x256x32xbf16, #tpu.memory_space<vmem>>, vector<1x256x32xbf16>
    %1 = vector.shape_cast %0 : vector<1x256x32xbf16> to vector<256x32xbf16>
    %c0_2 = arith.constant 0 : index
    %c0_3 = arith.constant 0 : index
    %2 = vector.load %arg2[%c0_2, %c0_3] : memref<32x128xbf16, #tpu.memory_space<vmem>>, vector<32x128xbf16>
    %cst = arith.constant dense<0.000000e+00> : vector<256x128xf32>
    %3 = tpu.matmul %1, %2, %cst {dimension_numbers = #tpu.dot_dimension_numbers<[1], [0], [0], [1], [0, 0, 1, 1], [], []>} : vector<256x32xbf16>, vector<32x128xbf16>, vector<256x128xf32> -> vector<256x128xf32>
    %c0_4 = arith.constant 0 : index
    %c0_5 = arith.constant 0 : index
    %4 = vector.load %arg5[%c0_4, %c0_5] : memref<256x128xf32, #tpu.memory_space<vmem>>, vector<256x128xf32>
    tpu.vector_store %arg5[%c0_4, %c0_5], %3 {strides = array<i32>} : memref<256x128xf32, #tpu.memory_space<vmem>>, vector<256x128xf32>,
    %c0_6 = arith.constant 0 : index
    %c0_7 = arith.constant 0 : index
    %5 = vector.load %arg5[%c0_6, %c0_7] : memref<256x128xf32, #tpu.memory_space<vmem>>, vector<256x128xf32>
    %c0_8 = arith.constant 0 : index
    %c0_9 = arith.constant 0 : index
    %6 = vector.load %arg5[%c0_8, %c0_9] : memref<256x128xf32, #tpu.memory_space<vmem>>, vector<256x128xf32>
    %c0_10 = arith.constant 0 : index
    %c0_11 = arith.constant 0 : index
    %c0_12 = arith.constant 0 : index
    %7 = vector.load %arg3[%c0_10, %c0_11, %c0_12] : memref<7x128x128xbf16, #tpu.memory_space<vmem>>, vector<1x128x128xbf16>
    %8 = vector.shape_cast %7 : vector<1x128x128xbf16> to vector<128x128xbf16>
    %9 = arith.truncf %6 : vector<256x128xf32> to vector<256x128xbf16>
    %cst_13 = arith.constant dense<0.000000e+00> : vector<256x128xf32>
    %10 = tpu.matmul %9, %8, %cst_13 {dimension_numbers = #tpu.dot_dimension_numbers<[1], [0], [0], [1], [0, 0, 1, 1], [], []>} : vector<256x128xbf16>, vector<128x128xbf16>, vector<256x128xf32> -> vector<256x128xf32>
    %11 = arith.addf %5, %10 : vector<256x128xf32>
    %c0_14 = arith.constant 0 : index
    %c0_15 = arith.constant 0 : index
    %12 = vector.load %arg5[%c0_14, %c0_15] : memref<256x128xf32, #tpu.memory_space<vmem>>, vector<256x128xf32>
    tpu.vector_store %arg5[%c0_14, %c0_15], %11 {strides = array<i32>} : memref<256x128xf32, #tpu.memory_space<vmem>>, vector<256x128xf32>,
    %c0_16 = arith.constant 0 : index
    %c0_17 = arith.constant 0 : index
    %13 = vector.load %arg5[%c0_16, %c0_17] : memref<256x128xf32, #tpu.memory_space<vmem>>, vector<256x128xf32>
    %c0_18 = arith.constant 0 : index
    %c0_19 = arith.constant 0 : index
    %14 = vector.load %arg5[%c0_18, %c0_19] : memref<256x128xf32, #tpu.memory_space<vmem>>, vector<256x128xf32>
    %c1 = arith.constant 1 : index
    %c0_20 = arith.constant 0 : index
    %c0_21 = arith.constant 0 : index
    %15 = vector.load %arg3[%c1, %c0_20, %c0_21] : memref<7x128x128xbf16, #tpu.memory_space<vmem>>, vector<1x128x128xbf16>
    %16 = vector.shape_cast %15 : vector<1x128x128xbf16> to vector<128x128xbf16>
    %17 = arith.truncf %14 : vector<256x128xf32> to vector<256x128xbf16>
    %cst_22 = arith.constant dense<0.000000e+00> : vector<256x128xf32>
    %18 = tpu.matmul %17, %16, %cst_22 {dimension_numbers = #tpu.dot_dimension_numbers<[1], [0], [0], [1], [0, 0, 1, 1], [], []>} : vector<256x128xbf16>, vector<128x128xbf16>, vector<256x128xf32> -> vector<256x128xf32>
    %19 = arith.addf %13, %18 : vector<256x128xf32>
    %c0_23 = arith.constant 0 : index
    %c0_24 = arith.constant 0 : index
    %20 = vector.load %arg5[%c0_23, %c0_24] : memref<256x128xf32, #tpu.memory_space<vmem>>, vector<256x128xf32>
    tpu.vector_store %arg5[%c0_23, %c0_24], %19 {strides = array<i32>} : memref<256x128xf32, #tpu.memory_space<vmem>>, vector<256x128xf32>,
    %c0_25 = arith.constant 0 : index
    %c0_26 = arith.constant 0 : index
    %21 = vector.load %arg5[%c0_25, %c0_26] : memref<256x128xf32, #tpu.memory_space<vmem>>, vector<256x128xf32>
    %c0_27 = arith.constant 0 : index
    %c0_28 = arith.constant 0 : index
    %22 = vector.load %arg5[%c0_27, %c0_28] : memref<256x128xf32, #tpu.memory_space<vmem>>, vector<256x128xf32>
    %c2 = arith.constant 2 : index
    %c0_29 = arith.constant 0 : index
    %c0_30 = arith.constant 0 : index
    %23 = vector.load %arg3[%c2, %c0_29, %c0_30] : memref<7x128x128xbf16, #tpu.memory_space<vmem>>, vector<1x128x128xbf16>
    %24 = vector.shape_cast %23 : vector<1x128x128xbf16> to vector<128x128xbf16>
    %25 = arith.truncf %22 : vector<256x128xf32> to vector<256x128xbf16>
    %cst_31 = arith.constant dense<0.000000e+00> : vector<256x128xf32>
    %26 = tpu.matmul %25, %24, %cst_31 {dimension_numbers = #tpu.dot_dimension_numbers<[1], [0], [0], [1], [0, 0, 1, 1], [], []>} : vector<256x128xbf16>, vector<128x128xbf16>, vector<256x128xf32> -> vector<256x128xf32>
    %27 = arith.addf %21, %26 : vector<256x128xf32>
    %c0_32 = arith.constant 0 : index
    %c0_33 = arith.constant 0 : index
    %28 = vector.load %arg5[%c0_32, %c0_33] : memref<256x128xf32, #tpu.memory_space<vmem>>, vector<256x128xf32>
    tpu.vector_store %arg5[%c0_32, %c0_33], %27 {strides = array<i32>} : memref<256x128xf32, #tpu.memory_space<vmem>>, vector<256x128xf32>,
    %c0_34 = arith.constant 0 : index
    %c0_35 = arith.constant 0 : index
    %29 = vector.load %arg5[%c0_34, %c0_35] : memref<256x128xf32, #tpu.memory_space<vmem>>, vector<64x128xf32>
    %c3 = arith.constant 3 : index
    %c0_36 = arith.constant 0 : index
    %c0_37 = arith.constant 0 : index
    %30 = vector.load %arg3[%c3, %c0_36, %c0_37] : memref<7x128x128xbf16, #tpu.memory_space<vmem>>, vector<1x128x128xbf16>
    %31 = vector.shape_cast %30 : vector<1x128x128xbf16> to vector<128x128xbf16>
    %32 = arith.truncf %29 : vector<64x128xf32> to vector<64x128xbf16>
    %cst_38 = arith.constant dense<0.000000e+00> : vector<64x128xf32>
    %33 = tpu.matmul %32, %31, %cst_38 {dimension_numbers = #tpu.dot_dimension_numbers<[1], [0], [0], [1], [0, 0, 1, 1], [], []>} : vector<64x128xbf16>, vector<128x128xbf16>, vector<64x128xf32> -> vector<64x128xf32>
    %c0_39 = arith.constant 0 : index
    %c0_40 = arith.constant 0 : index
    %c0_41 = arith.constant 0 : index
    %34 = vector.load %arg4[%c0_39, %c0_40, %c0_41] : memref<1x64x128xf32, #tpu.memory_space<vmem>>, vector<1x64x128xf32>
    %35 = vector.shape_cast %34 : vector<1x64x128xf32> to vector<64x128xf32>
    %36 = vector.shape_cast %33 : vector<64x128xf32> to vector<1x64x128xf32>
    tpu.vector_store %arg4[%c0_39, %c0_40, %c0_41], %36 {strides = array<i32>} : memref<1x64x128xf32, #tpu.memory_space<vmem>>, vector<1x64x128xf32>,
    %c0_42 = arith.constant 0 : index
    %c0_43 = arith.constant 0 : index
    %c0_44 = arith.constant 0 : index
    %37 = vector.load %arg4[%c0_42, %c0_43, %c0_44] : memref<1x64x128xf32, #tpu.memory_space<vmem>>, vector<1x64x128xf32>
    %38 = vector.shape_cast %37 : vector<1x64x128xf32> to vector<64x128xf32>
    %c0_45 = arith.constant 0 : index
    %c0_46 = arith.constant 0 : index
    %c0_47 = arith.constant 0 : index
    %39 = vector.load %arg4[%c0_45, %c0_46, %c0_47] : memref<1x64x128xf32, #tpu.memory_space<vmem>>, vector<1x64x128xf32>
    %40 = vector.shape_cast %39 : vector<1x64x128xf32> to vector<64x128xf32>
    %c4 = arith.constant 4 : index
    %c0_48 = arith.constant 0 : index
    %c0_49 = arith.constant 0 : index
    %41 = vector.load %arg3[%c4, %c0_48, %c0_49] : memref<7x128x128xbf16, #tpu.memory_space<vmem>>, vector<1x128x128xbf16>
    %42 = vector.shape_cast %41 : vector<1x128x128xbf16> to vector<128x128xbf16>
    %43 = arith.truncf %40 : vector<64x128xf32> to vector<64x128xbf16>
    %cst_50 = arith.constant dense<0.000000e+00> : vector<64x128xf32>
    %44 = tpu.matmul %43, %42, %cst_50 {dimension_numbers = #tpu.dot_dimension_numbers<[1], [0], [0], [1], [0, 0, 1, 1], [], []>} : vector<64x128xbf16>, vector<128x128xbf16>, vector<64x128xf32> -> vector<64x128xf32>
    %45 = arith.addf %38, %44 : vector<64x128xf32>
    %c0_51 = arith.constant 0 : index
    %c0_52 = arith.constant 0 : index
    %c0_53 = arith.constant 0 : index
    %46 = vector.load %arg4[%c0_51, %c0_52, %c0_53] : memref<1x64x128xf32, #tpu.memory_space<vmem>>, vector<1x64x128xf32>
    %47 = vector.shape_cast %46 : vector<1x64x128xf32> to vector<64x128xf32>
    %48 = vector.shape_cast %45 : vector<64x128xf32> to vector<1x64x128xf32>
    tpu.vector_store %arg4[%c0_51, %c0_52, %c0_53], %48 {strides = array<i32>} : memref<1x64x128xf32, #tpu.memory_space<vmem>>, vector<1x64x128xf32>,
    %c0_54 = arith.constant 0 : index
    %c0_55 = arith.constant 0 : index
    %c0_56 = arith.constant 0 : index
    %49 = vector.load %arg4[%c0_54, %c0_55, %c0_56] : memref<1x64x128xf32, #tpu.memory_space<vmem>>, vector<1x64x128xf32>
    %50 = vector.shape_cast %49 : vector<1x64x128xf32> to vector<64x128xf32>
    %c0_57 = arith.constant 0 : index
    %c0_58 = arith.constant 0 : index
    %c0_59 = arith.constant 0 : index
    %51 = vector.load %arg4[%c0_57, %c0_58, %c0_59] : memref<1x64x128xf32, #tpu.memory_space<vmem>>, vector<1x64x128xf32>
    %52 = vector.shape_cast %51 : vector<1x64x128xf32> to vector<64x128xf32>
    %c5 = arith.constant 5 : index
    %c0_60 = arith.constant 0 : index
    %c0_61 = arith.constant 0 : index
    %53 = vector.load %arg3[%c5, %c0_60, %c0_61] : memref<7x128x128xbf16, #tpu.memory_space<vmem>>, vector<1x128x128xbf16>
    %54 = vector.shape_cast %53 : vector<1x128x128xbf16> to vector<128x128xbf16>
    %55 = arith.truncf %52 : vector<64x128xf32> to vector<64x128xbf16>
    %cst_62 = arith.constant dense<0.000000e+00> : vector<64x128xf32>
    %56 = tpu.matmul %55, %54, %cst_62 {dimension_numbers = #tpu.dot_dimension_numbers<[1], [0], [0], [1], [0, 0, 1, 1], [], []>} : vector<64x128xbf16>, vector<128x128xbf16>, vector<64x128xf32> -> vector<64x128xf32>
    %57 = arith.addf %50, %56 : vector<64x128xf32>
    %c0_63 = arith.constant 0 : index
    %c0_64 = arith.constant 0 : index
    %c0_65 = arith.constant 0 : index
    %58 = vector.load %arg4[%c0_63, %c0_64, %c0_65] : memref<1x64x128xf32, #tpu.memory_space<vmem>>, vector<1x64x128xf32>
    %59 = vector.shape_cast %58 : vector<1x64x128xf32> to vector<64x128xf32>
    %60 = vector.shape_cast %57 : vector<64x128xf32> to vector<1x64x128xf32>
    tpu.vector_store %arg4[%c0_63, %c0_64, %c0_65], %60 {strides = array<i32>} : memref<1x64x128xf32, #tpu.memory_space<vmem>>, vector<1x64x128xf32>,
    %c0_66 = arith.constant 0 : index
    %c0_67 = arith.constant 0 : index
    %c0_68 = arith.constant 0 : index
    %61 = vector.load %arg4[%c0_66, %c0_67, %c0_68] : memref<1x64x128xf32, #tpu.memory_space<vmem>>, vector<1x64x128xf32>
    %62 = vector.shape_cast %61 : vector<1x64x128xf32> to vector<64x128xf32>
    %c6 = arith.constant 6 : index
    %c0_69 = arith.constant 0 : index
    %c0_70 = arith.constant 0 : index
    %63 = vector.load %arg3[%c6, %c0_69, %c0_70] : memref<7x128x128xbf16, #tpu.memory_space<vmem>>, vector<1x128x128xbf16>
    %64 = vector.shape_cast %63 : vector<1x128x128xbf16> to vector<128x128xbf16>
    %65 = arith.truncf %62 : vector<64x128xf32> to vector<64x128xbf16>
    %cst_71 = arith.constant dense<0.000000e+00> : vector<64x128xf32>
    %66 = tpu.matmul %65, %64, %cst_71 {dimension_numbers = #tpu.dot_dimension_numbers<[1], [0], [0], [1], [0, 0, 1, 1], [], []>} : vector<64x128xbf16>, vector<128x128xbf16>, vector<64x128xf32> -> vector<64x128xf32>
    %c0_72 = arith.constant 0 : index
    %c0_73 = arith.constant 0 : index
    %c0_74 = arith.constant 0 : index
    %67 = vector.load %arg4[%c0_72, %c0_73, %c0_74] : memref<1x64x128xf32, #tpu.memory_space<vmem>>, vector<1x64x128xf32>
    %68 = vector.shape_cast %67 : vector<1x64x128xf32> to vector<64x128xf32>
    %69 = vector.shape_cast %66 : vector<64x128xf32> to vector<1x64x128xf32>
    tpu.vector_store %arg4[%c0_72, %c0_73, %c0_74], %69 {strides = array<i32>} : memref<1x64x128xf32, #tpu.memory_space<vmem>>, vector<1x64x128xf32>,
    return
  }
  func.func @transform_0(%arg0: i32) -> (i32, i32, i32) {
    %c0_i32 = arith.constant 0 : i32
    %c0_i32_0 = arith.constant 0 : i32
    %c0_i32_1 = arith.constant 0 : i32
    return %arg0, %c0_i32, %c0_i32_0 : i32, i32, i32
  }
  func.func @transform_1(%arg0: i32) -> (i32, i32) {
    %c0_i32 = arith.constant 0 : i32
    %c0_i32_0 = arith.constant 0 : i32
    %c0_i32_1 = arith.constant 0 : i32
    return %c0_i32, %c0_i32_0 : i32, i32
  }
  func.func @transform_2(%arg0: i32) -> (i32, i32, i32) {
    %c0_i32 = arith.constant 0 : i32
    %c0_i32_0 = arith.constant 0 : i32
    %c0_i32_1 = arith.constant 0 : i32
    %c0_i32_2 = arith.constant 0 : i32
    return %c0_i32, %c0_i32_0, %c0_i32_1 : i32, i32, i32
  }
  func.func @transform_3(%arg0: i32) -> (i32, i32, i32) {
    %c0_i32 = arith.constant 0 : i32
    %c0_i32_0 = arith.constant 0 : i32
    %c0_i32_1 = arith.constant 0 : i32
    return %arg0, %c0_i32, %c0_i32_0 : i32, i32, i32
  }
}

</mosaic_0001>

<llo_original>
// kernel: forward_pallas.1
$region0: #{forward_pallas.1}
  #allocation0 [shape = 'u32[]', space=smem, size = 0x4, offset = 0x4, fixed_abs, tag = 'smem constant byte address 0x4 - core index']
  #allocation1 [shape = 'u32[72,128]{1,0:T(1,128)}', space=vmem, size = 0x9000, scoped, tag = 'internal scratch']
  #allocation2 [shape = 'f32[256,128]{1,0:T(8,128)}', space=vmem, size = 0x20000, scoped, tag = 'scratch operand']
  %s0 = inlined_call_operand.vmem [shape: bf16[2,256,32], index: 0, kind: input, shape index: {}]
  %s1 = inlined_call_operand.vmem [shape: bf16[32,128], index: 1, kind: input, shape index: {}]
  %s2 = inlined_call_operand.vmem [shape: bf16[7,128,128], index: 2, kind: input, shape index: {}]
  %s3 = inlined_call_operand.vmem [shape: f32[2,64,128], index: 3, kind: output, shape index: {}]
  %s4 = sld [smem:[#allocation0]]
  $region45: #{forward_pallas.1} parent=0
    _
  %s6 = ssub.s32 1, %s4
  %s7 = scalar_select 0, %s6, %s4
  loop: start=0, step=1, limit=4
  $region2: #{forward_pallas.1} parent=0 // loop_pre_header
    _
  $region3: #{forward_pallas.1} parent=0 // loop_header
    %s9 = sphi 0, %s13
    %p10 = scmp.ge.s32.totalorder %s9, 4
    %s19 = sphi 0, %s21
    %s22 = sphi 0, %s19
    %s23 = sphi 0, %s22
    %s39 = sphi 0, %s23
    %s43 = sphi 0, %s43
    %s45 = sphi 0, %s43
    %s46 = sphi 0, %s45
    %s60 = sphi 0, %s46
    %s64 = sphi 0, %s64
    %s66 = sphi 0, %s64
    %s67 = sphi 0, %s66
    %s81 = sphi 0, %s67
    %s87 = sphi 0, %s89
    %s90 = sphi 0, %s87
    %s91 = sphi 0, %s90
    %s107 = sphi 0, %s91
  $region4: #{forward_pallas.1} parent=0 // loop_header_branch
    %12 = sbr.rel (%p10) target = $region8
  $region5: #{forward_pallas.1} parent=0 // loop_body
    %s14 = ssub.s32 %s9, 1
    %s15 = ssub.s32 %s9, 2
    %s16 = sadd.s32 %s9, 1
    %s17 = ssub.s32 %s9, %s16
    %p18 = scmp.eq.s32.totalorder %s17, 0
    %s20 = sadd.s32 %s19, 1
    %s21 = scalar_select %p18, %s19, %s20
    %p24 = pneg %p18
    %p25 = scmp.eq.s32.totalorder %s9, 1
    %p26 = por %p24, %p25
    %p27 = scmp.ne.s32.totalorder %s19, %s22
    %p28 = scmp.eq.s32.totalorder %s9, 0
    %p29 = por %p27, %p28
    %p30 = scmp.ne.s32.totalorder %s19, %s22
    %p31 = scmp.eq.s32.totalorder %s14, 1
    %p32 = por %p30, %p31
    %p33 = scmp.ne.s32.totalorder %s22, %s23
    %p34 = scmp.eq.s32.totalorder %s14, 0
    %p35 = por %p33, %p34
    %p36 = scmp.ne.s32.totalorder %s22, %s23
    %p37 = scmp.eq.s32.totalorder %s15, 1
    %p38 = por %p36, %p37
    %p40 = scmp.ne.s32.totalorder %s23, %s39
    %p41 = scmp.eq.s32.totalorder %s15, 0
    %p42 = por %p40, %p41
    %s44 = sadd.s32 %s43, 1
    %p47 = scmp.eq.s32.totalorder %s9, 1
    %p48 = scmp.ne.s32.totalorder %s43, %s45
    %p49 = scmp.eq.s32.totalorder %s9, 0
    %p50 = por %p48, %p49
    %p51 = scmp.ne.s32.totalorder %s43, %s45
    %p52 = scmp.eq.s32.totalorder %s14, 1
    %p53 = por %p51, %p52
    %p54 = scmp.ne.s32.totalorder %s45, %s46
    %p55 = scmp.eq.s32.totalorder %s14, 0
    %p56 = por %p54, %p55
    %p57 = scmp.ne.s32.totalorder %s45, %s46
    %p58 = scmp.eq.s32.totalorder %s15, 1
    %p59 = por %p57, %p58
    %p61 = scmp.ne.s32.totalorder %s46, %s60
    %p62 = scmp.eq.s32.totalorder %s15, 0
    %p63 = por %p61, %p62
    %s65 = sadd.s32 %s64, 1
    %p68 = scmp.eq.s32.totalorder %s9, 1
    %p69 = scmp.ne.s32.totalorder %s64, %s66
    %p70 = scmp.eq.s32.totalorder %s9, 0
    %p71 = por %p69, %p70
    %p72 = scmp.ne.s32.totalorder %s64, %s66
    %p73 = scmp.eq.s32.totalorder %s14, 1
    %p74 = por %p72, %p73
    %p75 = scmp.ne.s32.totalorder %s66, %s67
    %p76 = scmp.eq.s32.totalorder %s14, 0
    %p77 = por %p75, %p76
    %p78 = scmp.ne.s32.totalorder %s66, %s67
    %p79 = scmp.eq.s32.totalorder %s15, 1
    %p80 = por %p78, %p79
    %p82 = scmp.ne.s32.totalorder %s67, %s81
    %p83 = scmp.eq.s32.totalorder %s15, 0
    %p84 = por %p82, %p83
    %s85 = ssub.s32 %s9, %s16
    %p86 = scmp.eq.s32.totalorder %s85, 0
    %s88 = sadd.s32 %s87, 1
    %s89 = scalar_select %p86, %s87, %s88
    %p92 = pneg %p86
    %p93 = scmp.eq.s32.totalorder %s9, 1
    %p94 = por %p92, %p93
    %p95 = scmp.ne.s32.totalorder %s87, %s90
    %p96 = scmp.eq.s32.totalorder %s9, 0
    %p97 = por %p95, %p96
    %p98 = scmp.ne.s32.totalorder %s87, %s90
    %p99 = scmp.eq.s32.totalorder %s14, 1
    %p100 = por %p98, %p99
    %p101 = scmp.ne.s32.totalorder %s90, %s91
    %p102 = scmp.eq.s32.totalorder %s14, 0
    %p103 = por %p101, %p102
    %p104 = scmp.ne.s32.totalorder %s90, %s91
    %p105 = scmp.eq.s32.totalorder %s15, 1
    %p106 = por %p104, %p105
    %p108 = scmp.ne.s32.totalorder %s91, %s107
    %p109 = scmp.eq.s32.totalorder %s15, 0
    %p110 = por %p108, %p109
    %p111 = scmp.le.s32.totalorder 1, %s9
    %p112 = scmp.lt.s32.totalorder %s9, 3
    %p113 = pnand %p111, %p112
    %p114 = pneg %p113
    // Predicated region
    $region9: #{forward_pallas.1} parent=5 // pred_check
      _
    $region10: #{forward_pallas.1} parent=5 // pred_check_branch
      %116 = sbr.rel (%p113) target = $region12
    $region11: #{forward_pallas.1} parent=5 // pred_region
      %s117 = ssub.s32 %s9, 1
      // Predicated region
      $region13: #{forward_pallas.1} parent=11 // pred_check
        %p118 = pneg %p56
      $region14: #{forward_pallas.1} parent=11 // pred_check_branch
        %120 = sbr.rel (%p118) target = $region16
      $region15: #{forward_pallas.1} parent=11 // pred_region
        _
      $region16: #{forward_pallas.1} parent=11 // pred_fallthru
        _
      // Predicated region
      $region17: #{forward_pallas.1} parent=11 // pred_check
        %p121 = pneg %p77
      $region18: #{forward_pallas.1} parent=11 // pred_check_branch
        %123 = sbr.rel (%p121) target = $region20
      $region19: #{forward_pallas.1} parent=11 // pred_region
        _
      $region20: #{forward_pallas.1} parent=11 // pred_fallthru
        _
    $region12: #{forward_pallas.1} parent=5 // pred_fallthru
      _
    %p124 = scmp.lt.s32.totalorder %s9, 2
    // Predicated region
    $region21: #{forward_pallas.1} parent=5 // pred_check
      %p125 = pneg %p124
    $region22: #{forward_pallas.1} parent=5 // pred_check_branch
      %127 = sbr.rel (%p125) target = $region24
    $region23: #{forward_pallas.1} parent=5 // pred_region
      // Predicated region
      $region25: #{forward_pallas.1} parent=23 // pred_check
        %p128 = pneg %p29
      $region26: #{forward_pallas.1} parent=23 // pred_check_branch
        %130 = sbr.rel (%p128) target = $region28
      $region27: #{forward_pallas.1} parent=23 // pred_region
        %p131 = scmp.lt.s32.totalorder %s9, 1
        %s132 = scalar_select %p131, %s9, 1
        %s133 = smul.addr %s132, 32
        %s134 = smul.addr %s133, 4
        %s135 = scalar_lea.vmem %s0, %s134
      $region28: #{forward_pallas.1} parent=23 // pred_fallthru
        _
    $region24: #{forward_pallas.1} parent=5 // pred_fallthru
      _
    %p136 = scmp.le.s32.totalorder 1, %s9
    %p137 = scmp.lt.s32.totalorder %s9, 3
    %p138 = pnand %p136, %p137
    %p139 = pneg %p138
    // Predicated region
    $region29: #{forward_pallas.1} parent=5 // pred_check
      _
    $region30: #{forward_pallas.1} parent=5 // pred_check_branch
      %141 = sbr.rel (%p138) target = $region32
    $region31: #{forward_pallas.1} parent=5 // pred_region
      %s142 = ssub.s32 %s9, 1
      %p143 = scmp.lt.s32.totalorder %s14, 1
      %s144 = scalar_select %p143, %s14, 1
      %s145 = smul.addr %s144, 32
      %s146 = smul.addr %s145, 4
      %s147 = scalar_lea.vmem %s0, %s146
      %p148 = pneg %p35
      %p149 = pneg %p32
      %p150 = pneg %p56
      %p151 = pneg %p53
      %p152 = pneg %p77
      %p153 = pneg %p74
      %p154 = pneg %p103
      %p155 = pneg %p100
      %p156 = scmp.lt.s32.totalorder %s14, 1
      %s157 = scalar_select %p156, %s14, 1
      %s158 = smul.addr %s157, 8
      %s159 = smul.addr %s158, 8
      %s160 = scalar_lea.vmem %s3, %s159
      %p161 = scmp.lt.s32.totalorder %s14, 1
      %s162 = scalar_select %p161, %s14, 1
      %s163 = smul.addr %s162, 32
      %s164 = smul.addr %s163, 4
      %s165 = scalar_lea.vmem %s0, %s164
      %p166 = scmp.lt.s32.totalorder %s14, 1
      %s167 = scalar_select %p166, %s14, 1
      %s168 = smul.addr %s167, 8
      %s169 = smul.addr %s168, 8
      %s170 = scalar_lea.vmem %s3, %s169
      %v172 = vld [vmem:[%s165] sm:$0xf]
      %v173 = vld [vmem:[%s165 + $0x4] sm:$0xf]
      %v174 = vld [vmem:[%s165 + $0x8] sm:$0xf]
      %v175 = vld [vmem:[%s165 + $0xc] sm:$0xf]
      %v176 = vld [vmem:[%s165 + $0x10] sm:$0xf]
      %v177 = vld [vmem:[%s165 + $0x14] sm:$0xf]
      %v178 = vld [vmem:[%s165 + $0x18] sm:$0xf]
      %v179 = vld [vmem:[%s165 + $0x1c] sm:$0xf]
      %v180 = vld [vmem:[%s165 + $0x20] sm:$0xf]
      %v181 = vld [vmem:[%s165 + $0x24] sm:$0xf]
      %v182 = vld [vmem:[%s165 + $0x28] sm:$0xf]
      %v183 = vld [vmem:[%s165 + $0x2c] sm:$0xf]
      %v184 = vld [vmem:[%s165 + $0x30] sm:$0xf]
      %v185 = vld [vmem:[%s165 + $0x34] sm:$0xf]
      %v186 = vld [vmem:[%s165 + $0x38] sm:$0xf]
      %v187 = vld [vmem:[%s165 + $0x3c] sm:$0xf]
      %v188 = vld [vmem:[%s165 + $0x40] sm:$0xf]
      %v189 = vld [vmem:[%s165 + $0x44] sm:$0xf]
      %v190 = vld [vmem:[%s165 + $0x48] sm:$0xf]
      %v191 = vld [vmem:[%s165 + $0x4c] sm:$0xf]
      %v192 = vld [vmem:[%s165 + $0x50] sm:$0xf]
      %v193 = vld [vmem:[%s165 + $0x54] sm:$0xf]
      %v194 = vld [vmem:[%s165 + $0x58] sm:$0xf]
      %v195 = vld [vmem:[%s165 + $0x5c] sm:$0xf]
      %v196 = vld [vmem:[%s165 + $0x60] sm:$0xf]
      %v197 = vld [vmem:[%s165 + $0x64] sm:$0xf]
      %v198 = vld [vmem:[%s165 + $0x68] sm:$0xf]
      %v199 = vld [vmem:[%s165 + $0x6c] sm:$0xf]
      %v200 = vld [vmem:[%s165 + $0x70] sm:$0xf]
      %v201 = vld [vmem:[%s165 + $0x74] sm:$0xf]
      %v202 = vld [vmem:[%s165 + $0x78] sm:$0xf]
      %v203 = vld [vmem:[%s165 + $0x7c] sm:$0xf]
      %v204 = vld [vmem:[%s1] sm:$0xf]
      %v205 = vld [vmem:[%s1 + $0x4] sm:$0xf]
      %v206 = vld [vmem:[%s1 + $0x8] sm:$0xf]
      %v207 = vld [vmem:[%s1 + $0xc] sm:$0xf]
      %v240 = vunpack.c.l.b16 %v172
      %v241 = vunpack.c.l.b16 %v173
      %v242 = vunpack.c.l.b16 %v174
      %v243 = vunpack.c.l.b16 %v175
      %v244 = vunpack.c.l.b16 %v176
      %v245 = vunpack.c.l.b16 %v177
      %v246 = vunpack.c.l.b16 %v178
      %v247 = vunpack.c.l.b16 %v179
      %v248 = vunpack.c.l.b16 %v180
      %v249 = vunpack.c.l.b16 %v181
      %v250 = vunpack.c.l.b16 %v182
      %v251 = vunpack.c.l.b16 %v183
      %v252 = vunpack.c.l.b16 %v184
      %v253 = vunpack.c.l.b16 %v185
      %v254 = vunpack.c.l.b16 %v186
      %v255 = vunpack.c.l.b16 %v187
      %v256 = vunpack.c.l.b16 %v188
      %v257 = vunpack.c.l.b16 %v189
      %v258 = vunpack.c.l.b16 %v190
      %v259 = vunpack.c.l.b16 %v191
      %v260 = vunpack.c.l.b16 %v192
      %v261 = vunpack.c.l.b16 %v193
      %v262 = vunpack.c.l.b16 %v194
      %v263 = vunpack.c.l.b16 %v195
      %v264 = vunpack.c.l.b16 %v196
      %v265 = vunpack.c.l.b16 %v197
      %v266 = vunpack.c.l.b16 %v198
      %v267 = vunpack.c.l.b16 %v199
      %v268 = vunpack.c.l.b16 %v200
      %v269 = vunpack.c.l.b16 %v201
      %v270 = vunpack.c.l.b16 %v202
      %v271 = vunpack.c.l.b16 %v203
      %v272 = vpack.c.b16 %v241, %v240
      %v273 = vpack.c.b16 %v243, %v242
      %v274 = vpack.c.b16 %v245, %v244
      %v275 = vpack.c.b16 %v247, %v246
      %v276 = vpack.c.b16 %v249, %v248
      %v277 = vpack.c.b16 %v251, %v250
      %v278 = vpack.c.b16 %v253, %v252
      %v279 = vpack.c.b16 %v255, %v254
      %v280 = vpack.c.b16 %v257, %v256
      %v281 = vpack.c.b16 %v259, %v258
      %v282 = vpack.c.b16 %v261, %v260
      %v283 = vpack.c.b16 %v263, %v262
      %v284 = vpack.c.b16 %v265, %v264
      %v285 = vpack.c.b16 %v267, %v266
      %v286 = vpack.c.b16 %v269, %v268
      %v287 = vpack.c.b16 %v271, %v270
      %v292 = vunpack.c.l.b16 %v204
      %v293 = vunpack.c.l.b16 %v205
      %v294 = vunpack.c.l.b16 %v206
      %v295 = vunpack.c.l.b16 %v207
      %v296 = vpack.c.b16 %v293, %v292
      %v297 = vpack.c.b16 %v295, %v294
      %vm300 = vcmask 261120
      %v302 = vsel %vm300, %v272, 0
      %v305 = vsel %vm300, %v273, 0
      %v308 = vsel %vm300, %v274, 0
      %v311 = vsel %vm300, %v275, 0
      %v314 = vsel %vm300, %v276, 0
      %v317 = vsel %vm300, %v277, 0
      %v320 = vsel %vm300, %v278, 0
      %v323 = vsel %vm300, %v279, 0
      %v326 = vsel %vm300, %v280, 0
      %v329 = vsel %vm300, %v281, 0
      %v332 = vsel %vm300, %v282, 0
      %v335 = vsel %vm300, %v283, 0
      %v338 = vsel %vm300, %v284, 0
      %v341 = vsel %vm300, %v285, 0
      %v344 = vsel %vm300, %v286, 0
      %v347 = vsel %vm300, %v287, 0
      %349 = vmatpush.bf16.msra.mxu0 0
      %350 = vmatpush.bf16.msra.mxu0 0
      %351 = vmatpush.bf16.msra.mxu0 0
      %352 = vmatpush.bf16.msra.mxu0 0
      %353 = vmatpush.bf16.msra.mxu0 0
      %354 = vmatpush.bf16.msra.mxu0 0
      %355 = vmatpush.bf16.msra.mxu0 %v297
      %356 = vmatpush.bf16.msra.mxu0 %v296
      %357 = vmatmul.bf16.gmra.mxu0 %v302
      %v358 = vpop.f32.mrf.mxu0
      %v359 = vadd.f32 0.0, %v358
      %v360 = vpop.f32.mrf.mxu0
      %v361 = vadd.f32 0.0, %v360
      %362 = vmatmul.bf16.gmra.mxu0 %v305
      %v363 = vpop.f32.mrf.mxu0
      %v364 = vadd.f32 0.0, %v363
      %v365 = vpop.f32.mrf.mxu0
      %v366 = vadd.f32 0.0, %v365
      %367 = vmatmul.bf16.gmra.mxu0 %v308
      %v368 = vpop.f32.mrf.mxu0
      %v369 = vadd.f32 0.0, %v368
      %v370 = vpop.f32.mrf.mxu0
      %v371 = vadd.f32 0.0, %v370
      %372 = vmatmul.bf16.gmra.mxu0 %v311
      %v373 = vpop.f32.mrf.mxu0
      %v374 = vadd.f32 0.0, %v373
      %v375 = vpop.f32.mrf.mxu0
      %v376 = vadd.f32 0.0, %v375
      %377 = vmatmul.bf16.gmra.mxu0 %v314
      %v378 = vpop.f32.mrf.mxu0
      %v379 = vadd.f32 0.0, %v378
      %v380 = vpop.f32.mrf.mxu0
      %v381 = vadd.f32 0.0, %v380
      %382 = vmatmul.bf16.gmra.mxu0 %v317
      %v383 = vpop.f32.mrf.mxu0
      %v384 = vadd.f32 0.0, %v383
      %v385 = vpop.f32.mrf.mxu0
      %v386 = vadd.f32 0.0, %v385
      %387 = vmatmul.bf16.gmra.mxu0 %v320
      %v388 = vpop.f32.mrf.mxu0
      %v389 = vadd.f32 0.0, %v388
      %v390 = vpop.f32.mrf.mxu0
      %v391 = vadd.f32 0.0, %v390
      %392 = vmatmul.bf16.gmra.mxu0 %v323
      %v393 = vpop.f32.mrf.mxu0
      %v394 = vadd.f32 0.0, %v393
      %v395 = vpop.f32.mrf.mxu0
      %v396 = vadd.f32 0.0, %v395
      %397 = vmatmul.bf16.gmra.mxu0 %v326
      %v398 = vpop.f32.mrf.mxu0
      %v399 = vadd.f32 0.0, %v398
      %v400 = vpop.f32.mrf.mxu0
      %v401 = vadd.f32 0.0, %v400
      %402 = vmatmul.bf16.gmra.mxu0 %v329
      %v403 = vpop.f32.mrf.mxu0
      %v404 = vadd.f32 0.0, %v403
      %v405 = vpop.f32.mrf.mxu0
      %v406 = vadd.f32 0.0, %v405
      %407 = vmatmul.bf16.gmra.mxu0 %v332
      %v408 = vpop.f32.mrf.mxu0
      %v409 = vadd.f32 0.0, %v408
      %v410 = vpop.f32.mrf.mxu0
      %v411 = vadd.f32 0.0, %v410
      %412 = vmatmul.bf16.gmra.mxu0 %v335
      %v413 = vpop.f32.mrf.mxu0
      %v414 = vadd.f32 0.0, %v413
      %v415 = vpop.f32.mrf.mxu0
      %v416 = vadd.f32 0.0, %v415
      %417 = vmatmul.bf16.gmra.mxu0 %v338
      %v418 = vpop.f32.mrf.mxu0
      %v419 = vadd.f32 0.0, %v418
      %v420 = vpop.f32.mrf.mxu0
      %v421 = vadd.f32 0.0, %v420
      %422 = vmatmul.bf16.gmra.mxu0 %v341
      %v423 = vpop.f32.mrf.mxu0
      %v424 = vadd.f32 0.0, %v423
      %v425 = vpop.f32.mrf.mxu0
      %v426 = vadd.f32 0.0, %v425
      %427 = vmatmul.bf16.gmra.mxu0 %v344
      %v428 = vpop.f32.mrf.mxu0
      %v429 = vadd.f32 0.0, %v428
      %v430 = vpop.f32.mrf.mxu0
      %v431 = vadd.f32 0.0, %v430
      %432 = vmatmul.bf16.gmra.mxu0 %v347
      %v433 = vpop.f32.mrf.mxu0
      %v434 = vadd.f32 0.0, %v433
      %v435 = vpop.f32.mrf.mxu0
      %v436 = vadd.f32 0.0, %v435
      %437 = vdwg.mxu0
      %438 = vst [vmem:[#allocation2] sm:$0xff] %v359
      %439 = vst [vmem:[#allocation2 + $0x8] sm:$0xff] %v361
      %440 = vst [vmem:[#allocation2 + $0x10] sm:$0xff] %v364
      %441 = vst [vmem:[#allocation2 + $0x18] sm:$0xff] %v366
      %442 = vst [vmem:[#allocation2 + $0x20] sm:$0xff] %v369
      %443 = vst [vmem:[#allocation2 + $0x28] sm:$0xff] %v371
      %444 = vst [vmem:[#allocation2 + $0x30] sm:$0xff] %v374
      %445 = vst [vmem:[#allocation2 + $0x38] sm:$0xff] %v376
      %446 = vst [vmem:[#allocation2 + $0x40] sm:$0xff] %v379
      %447 = vst [vmem:[#allocation2 + $0x48] sm:$0xff] %v381
      %448 = vst [vmem:[#allocation2 + $0x50] sm:$0xff] %v384
      %449 = vst [vmem:[#allocation2 + $0x58] sm:$0xff] %v386
      %450 = vst [vmem:[#allocation2 + $0x60] sm:$0xff] %v389
      %451 = vst [vmem:[#allocation2 + $0x68] sm:$0xff] %v391
      %452 = vst [vmem:[#allocation2 + $0x70] sm:$0xff] %v394
      %453 = vst [vmem:[#allocation2 + $0x78] sm:$0xff] %v396
      %454 = vst [vmem:[#allocation2 + $0x80] sm:$0xff] %v399
      %455 = vst [vmem:[#allocation2 + $0x88] sm:$0xff] %v401
      %456 = vst [vmem:[#allocation2 + $0x90] sm:$0xff] %v404
      %457 = vst [vmem:[#allocation2 + $0x98] sm:$0xff] %v406
      %458 = vst [vmem:[#allocation2 + $0xa0] sm:$0xff] %v409
      %459 = vst [vmem:[#allocation2 + $0xa8] sm:$0xff] %v411
      %460 = vst [vmem:[#allocation2 + $0xb0] sm:$0xff] %v414
      %461 = vst [vmem:[#allocation2 + $0xb8] sm:$0xff] %v416
      %462 = vst [vmem:[#allocation2 + $0xc0] sm:$0xff] %v419
      %463 = vst [vmem:[#allocation2 + $0xc8] sm:$0xff] %v421
      %464 = vst [vmem:[#allocation2 + $0xd0] sm:$0xff] %v424
      %465 = vst [vmem:[#allocation2 + $0xd8] sm:$0xff] %v426
      %466 = vst [vmem:[#allocation2 + $0xe0] sm:$0xff] %v429
      %467 = vst [vmem:[#allocation2 + $0xe8] sm:$0xff] %v431
      %468 = vst [vmem:[#allocation2 + $0xf0] sm:$0xff] %v434
      %469 = vst [vmem:[#allocation2 + $0xf8] sm:$0xff] %v436
      %v470 = vld [vmem:[#allocation2] sm:$0xff]
      %v471 = vld [vmem:[#allocation2 + $0x8] sm:$0xff]
      %v472 = vld [vmem:[#allocation2 + $0x10] sm:$0xff]
      %v473 = vld [vmem:[#allocation2 + $0x18] sm:$0xff]
      %v474 = vld [vmem:[#allocation2 + $0x20] sm:$0xff]
      %v475 = vld [vmem:[#allocation2 + $0x28] sm:$0xff]
      %v476 = vld [vmem:[#allocation2 + $0x30] sm:$0xff]
      %v477 = vld [vmem:[#allocation2 + $0x38] sm:$0xff]
      %v478 = vld [vmem:[#allocation2 + $0x40] sm:$0xff]
      %v479 = vld [vmem:[#allocation2 + $0x48] sm:$0xff]
      %v480 = vld [vmem:[#allocation2 + $0x50] sm:$0xff]
      %v481 = vld [vmem:[#allocation2 + $0x58] sm:$0xff]
      %v482 = vld [vmem:[#allocation2 + $0x60] sm:$0xff]
      %v483 = vld [vmem:[#allocation2 + $0x68] sm:$0xff]
      %v484 = vld [vmem:[#allocation2 + $0x70] sm:$0xff]
      %v485 = vld [vmem:[#allocation2 + $0x78] sm:$0xff]
      %v486 = vld [vmem:[#allocation2 + $0x80] sm:$0xff]
      %v487 = vld [vmem:[#allocation2 + $0x88] sm:$0xff]
      %v488 = vld [vmem:[#allocation2 + $0x90] sm:$0xff]
      %v489 = vld [vmem:[#allocation2 + $0x98] sm:$0xff]
      %v490 = vld [vmem:[#allocation2 + $0xa0] sm:$0xff]
      %v491 = vld [vmem:[#allocation2 + $0xa8] sm:$0xff]
      %v492 = vld [vmem:[#allocation2 + $0xb0] sm:$0xff]
      %v493 = vld [vmem:[#allocation2 + $0xb8] sm:$0xff]
      %v494 = vld [vmem:[#allocation2 + $0xc0] sm:$0xff]
      %v495 = vld [vmem:[#allocation2 + $0xc8] sm:$0xff]
      %v496 = vld [vmem:[#allocation2 + $0xd0] sm:$0xff]
      %v497 = vld [vmem:[#allocation2 + $0xd8] sm:$0xff]
      %v498 = vld [vmem:[#allocation2 + $0xe0] sm:$0xff]
      %v499 = vld [vmem:[#allocation2 + $0xe8] sm:$0xff]
      %v500 = vld [vmem:[#allocation2 + $0xf0] sm:$0xff]
      %v501 = vld [vmem:[#allocation2 + $0xf8] sm:$0xff]
      %v502 = vld [vmem:[%s2] sm:$0xf]
      %v503 = vld [vmem:[%s2 + $0x4] sm:$0xf]
      %v504 = vld [vmem:[%s2 + $0x8] sm:$0xf]
      %v505 = vld [vmem:[%s2 + $0xc] sm:$0xf]
      %v506 = vld [vmem:[%s2 + $0x10] sm:$0xf]
      %v507 = vld [vmem:[%s2 + $0x14] sm:$0xf]
      %v508 = vld [vmem:[%s2 + $0x18] sm:$0xf]
      %v509 = vld [vmem:[%s2 + $0x1c] sm:$0xf]
      %v510 = vld [vmem:[%s2 + $0x20] sm:$0xf]
      %v511 = vld [vmem:[%s2 + $0x24] sm:$0xf]
      %v512 = vld [vmem:[%s2 + $0x28] sm:$0xf]
      %v513 = vld [vmem:[%s2 + $0x2c] sm:$0xf]
      %v514 = vld [vmem:[%s2 + $0x30] sm:$0xf]
      %v515 = vld [vmem:[%s2 + $0x34] sm:$0xf]
      %v516 = vld [vmem:[%s2 + $0x38] sm:$0xf]
      %v517 = vld [vmem:[%s2 + $0x3c] sm:$0xf]
      %v518 = vpack.c.bf16 %v471, %v470
      %v519 = vpack.c.bf16 %v473, %v472
      %v520 = vpack.c.bf16 %v475, %v474
      %v521 = vpack.c.bf16 %v477, %v476
      %v522 = vpack.c.bf16 %v479, %v478
      %v523 = vpack.c.bf16 %v481, %v480
      %v524 = vpack.c.bf16 %v483, %v482
      %v525 = vpack.c.bf16 %v485, %v484
      %v526 = vpack.c.bf16 %v487, %v486
      %v527 = vpack.c.bf16 %v489, %v488
      %v528 = vpack.c.bf16 %v491, %v490
      %v529 = vpack.c.bf16 %v493, %v492
      %v530 = vpack.c.bf16 %v495, %v494
      %v531 = vpack.c.bf16 %v497, %v496
      %v532 = vpack.c.bf16 %v499, %v498
      %v533 = vpack.c.bf16 %v501, %v500
      %v550 = vunpack.c.l.b16 %v502
      %v551 = vunpack.c.l.b16 %v503
      %v552 = vunpack.c.l.b16 %v504
      %v553 = vunpack.c.l.b16 %v505
      %v554 = vunpack.c.l.b16 %v506
      %v555 = vunpack.c.l.b16 %v507
      %v556 = vunpack.c.l.b16 %v508
      %v557 = vunpack.c.l.b16 %v509
      %v558 = vunpack.c.l.b16 %v510
      %v559 = vunpack.c.l.b16 %v511
      %v560 = vunpack.c.l.b16 %v512
      %v561 = vunpack.c.l.b16 %v513
      %v562 = vunpack.c.l.b16 %v514
      %v563 = vunpack.c.l.b16 %v515
      %v564 = vunpack.c.l.b16 %v516
      %v565 = vunpack.c.l.b16 %v517
      %v566 = vpack.c.b16 %v551, %v550
      %v567 = vpack.c.b16 %v553, %v552
      %v568 = vpack.c.b16 %v555, %v554
      %v569 = vpack.c.b16 %v557, %v556
      %v570 = vpack.c.b16 %v559, %v558
      %v571 = vpack.c.b16 %v561, %v560
      %v572 = vpack.c.b16 %v563, %v562
      %v573 = vpack.c.b16 %v565, %v564
      %582 = vmatpush.bf16.msra.mxu0 %v573
      %583 = vmatpush.bf16.msra.mxu0 %v572
      %584 = vmatpush.bf16.msra.mxu0 %v571
      %585 = vmatpush.bf16.msra.mxu0 %v570
      %586 = vmatpush.bf16.msra.mxu0 %v569
      %587 = vmatpush.bf16.msra.mxu0 %v568
      %588 = vmatpush.bf16.msra.mxu0 %v567
      %589 = vmatpush.bf16.msra.mxu0 %v566
      %590 = vmatmul.bf16.gmra.mxu0 %v518
      %v591 = vpop.f32.mrf.mxu0
      %v592 = vadd.f32 0.0, %v591
      %v593 = vpop.f32.mrf.mxu0
      %v594 = vadd.f32 0.0, %v593
      %595 = vmatmul.bf16.gmra.mxu0 %v519
      %v596 = vpop.f32.mrf.mxu0
      %v597 = vadd.f32 0.0, %v596
      %v598 = vpop.f32.mrf.mxu0
      %v599 = vadd.f32 0.0, %v598
      %600 = vmatmul.bf16.gmra.mxu0 %v520
      %v601 = vpop.f32.mrf.mxu0
      %v602 = vadd.f32 0.0, %v601
      %v603 = vpop.f32.mrf.mxu0
      %v604 = vadd.f32 0.0, %v603
      %605 = vmatmul.bf16.gmra.mxu0 %v521
      %v606 = vpop.f32.mrf.mxu0
      %v607 = vadd.f32 0.0, %v606
      %v608 = vpop.f32.mrf.mxu0
      %v609 = vadd.f32 0.0, %v608
      %610 = vmatmul.bf16.gmra.mxu0 %v522
      %v611 = vpop.f32.mrf.mxu0
      %v612 = vadd.f32 0.0, %v611
      %v613 = vpop.f32.mrf.mxu0
      %v614 = vadd.f32 0.0, %v613
      %615 = vmatmul.bf16.gmra.mxu0 %v523
      %v616 = vpop.f32.mrf.mxu0
      %v617 = vadd.f32 0.0, %v616
      %v618 = vpop.f32.mrf.mxu0
      %v619 = vadd.f32 0.0, %v618
      %620 = vmatmul.bf16.gmra.mxu0 %v524
      %v621 = vpop.f32.mrf.mxu0
      %v622 = vadd.f32 0.0, %v621
      %v623 = vpop.f32.mrf.mxu0
      %v624 = vadd.f32 0.0, %v623
      %625 = vmatmul.bf16.gmra.mxu0 %v525
      %v626 = vpop.f32.mrf.mxu0
      %v627 = vadd.f32 0.0, %v626
      %v628 = vpop.f32.mrf.mxu0
      %v629 = vadd.f32 0.0, %v628
      %630 = vmatmul.bf16.gmra.mxu0 %v526
      %v631 = vpop.f32.mrf.mxu0
      %v632 = vadd.f32 0.0, %v631
      %v633 = vpop.f32.mrf.mxu0
      %v634 = vadd.f32 0.0, %v633
      %635 = vmatmul.bf16.gmra.mxu0 %v527
      %v636 = vpop.f32.mrf.mxu0
      %v637 = vadd.f32 0.0, %v636
      %v638 = vpop.f32.mrf.mxu0
      %v639 = vadd.f32 0.0, %v638
      %640 = vmatmul.bf16.gmra.mxu0 %v528
      %v641 = vpop.f32.mrf.mxu0
      %v642 = vadd.f32 0.0, %v641
      %v643 = vpop.f32.mrf.mxu0
      %v644 = vadd.f32 0.0, %v643
      %645 = vmatmul.bf16.gmra.mxu0 %v529
      %v646 = vpop.f32.mrf.mxu0
      %v647 = vadd.f32 0.0, %v646
      %v648 = vpop.f32.mrf.mxu0
      %v649 = vadd.f32 0.0, %v648
      %650 = vmatmul.bf16.gmra.mxu0 %v530
      %v651 = vpop.f32.mrf.mxu0
      %v652 = vadd.f32 0.0, %v651
      %v653 = vpop.f32.mrf.mxu0
      %v654 = vadd.f32 0.0, %v653
      %655 = vmatmul.bf16.gmra.mxu0 %v531
      %v656 = vpop.f32.mrf.mxu0
      %v657 = vadd.f32 0.0, %v656
      %v658 = vpop.f32.mrf.mxu0
      %v659 = vadd.f32 0.0, %v658
      %660 = vmatmul.bf16.gmra.mxu0 %v532
      %v661 = vpop.f32.mrf.mxu0
      %v662 = vadd.f32 0.0, %v661
      %v663 = vpop.f32.mrf.mxu0
      %v664 = vadd.f32 0.0, %v663
      %665 = vmatmul.bf16.gmra.mxu0 %v533
      %v666 = vpop.f32.mrf.mxu0
      %v667 = vadd.f32 0.0, %v666
      %v668 = vpop.f32.mrf.mxu0
      %v669 = vadd.f32 0.0, %v668
      %670 = vdwg.mxu0
      %v671 = vadd.f32 %v470, %v592
      %v672 = vadd.f32 %v471, %v594
      %v673 = vadd.f32 %v472, %v597
      %v674 = vadd.f32 %v473, %v599
      %v675 = vadd.f32 %v474, %v602
      %v676 = vadd.f32 %v475, %v604
      %v677 = vadd.f32 %v476, %v607
      %v678 = vadd.f32 %v477, %v609
      %v679 = vadd.f32 %v478, %v612
      %v680 = vadd.f32 %v479, %v614
      %v681 = vadd.f32 %v480, %v617
      %v682 = vadd.f32 %v481, %v619
      %v683 = vadd.f32 %v482, %v622
      %v684 = vadd.f32 %v483, %v624
      %v685 = vadd.f32 %v484, %v627
      %v686 = vadd.f32 %v485, %v629
      %v687 = vadd.f32 %v486, %v632
      %v688 = vadd.f32 %v487, %v634
      %v689 = vadd.f32 %v488, %v637
      %v690 = vadd.f32 %v489, %v639
      %v691 = vadd.f32 %v490, %v642
      %v692 = vadd.f32 %v491, %v644
      %v693 = vadd.f32 %v492, %v647
      %v694 = vadd.f32 %v493, %v649
      %v695 = vadd.f32 %v494, %v652
      %v696 = vadd.f32 %v495, %v654
      %v697 = vadd.f32 %v496, %v657
      %v698 = vadd.f32 %v497, %v659
      %v699 = vadd.f32 %v498, %v662
      %v700 = vadd.f32 %v499, %v664
      %v701 = vadd.f32 %v500, %v667
      %v702 = vadd.f32 %v501, %v669
      %703 = vst [vmem:[#allocation2] sm:$0xff] %v671
      %704 = vst [vmem:[#allocation2 + $0x8] sm:$0xff] %v672
      %705 = vst [vmem:[#allocation2 + $0x10] sm:$0xff] %v673
      %706 = vst [vmem:[#allocation2 + $0x18] sm:$0xff] %v674
      %707 = vst [vmem:[#allocation2 + $0x20] sm:$0xff] %v675
      %708 = vst [vmem:[#allocation2 + $0x28] sm:$0xff] %v676
      %709 = vst [vmem:[#allocation2 + $0x30] sm:$0xff] %v677
      %710 = vst [vmem:[#allocation2 + $0x38] sm:$0xff] %v678
      %711 = vst [vmem:[#allocation2 + $0x40] sm:$0xff] %v679
      %712 = vst [vmem:[#allocation2 + $0x48] sm:$0xff] %v680
      %713 = vst [vmem:[#allocation2 + $0x50] sm:$0xff] %v681
      %714 = vst [vmem:[#allocation2 + $0x58] sm:$0xff] %v682
      %715 = vst [vmem:[#allocation2 + $0x60] sm:$0xff] %v683
      %716 = vst [vmem:[#allocation2 + $0x68] sm:$0xff] %v684
      %717 = vst [vmem:[#allocation2 + $0x70] sm:$0xff] %v685
      %718 = vst [vmem:[#allocation2 + $0x78] sm:$0xff] %v686
      %719 = vst [vmem:[#allocation2 + $0x80] sm:$0xff] %v687
      %720 = vst [vmem:[#allocation2 + $0x88] sm:$0xff] %v688
      %721 = vst [vmem:[#allocation2 + $0x90] sm:$0xff] %v689
      %722 = vst [vmem:[#allocation2 + $0x98] sm:$0xff] %v690
      %723 = vst [vmem:[#allocation2 + $0xa0] sm:$0xff] %v691
      %724 = vst [vmem:[#allocation2 + $0xa8] sm:$0xff] %v692
      %725 = vst [vmem:[#allocation2 + $0xb0] sm:$0xff] %v693
      %726 = vst [vmem:[#allocation2 + $0xb8] sm:$0xff] %v694
      %727 = vst [vmem:[#allocation2 + $0xc0] sm:$0xff] %v695
      %728 = vst [vmem:[#allocation2 + $0xc8] sm:$0xff] %v696
      %729 = vst [vmem:[#allocation2 + $0xd0] sm:$0xff] %v697
      %730 = vst [vmem:[#allocation2 + $0xd8] sm:$0xff] %v698
      %731 = vst [vmem:[#allocation2 + $0xe0] sm:$0xff] %v699
      %732 = vst [vmem:[#allocation2 + $0xe8] sm:$0xff] %v700
      %733 = vst [vmem:[#allocation2 + $0xf0] sm:$0xff] %v701
      %734 = vst [vmem:[#allocation2 + $0xf8] sm:$0xff] %v702
      %v735 = vld [vmem:[#allocation2] sm:$0xff]
      %v736 = vld [vmem:[#allocation2 + $0x8] sm:$0xff]
      %v737 = vld [vmem:[#allocation2 + $0x10] sm:$0xff]
      %v738 = vld [vmem:[#allocation2 + $0x18] sm:$0xff]
      %v739 = vld [vmem:[#allocation2 + $0x20] sm:$0xff]
      %v740 = vld [vmem:[#allocation2 + $0x28] sm:$0xff]
      %v741 = vld [vmem:[#allocation2 + $0x30] sm:$0xff]
      %v742 = vld [vmem:[#allocation2 + $0x38] sm:$0xff]
      %v743 = vld [vmem:[#allocation2 + $0x40] sm:$0xff]
      %v744 = vld [vmem:[#allocation2 + $0x48] sm:$0xff]
      %v745 = vld [vmem:[#allocation2 + $0x50] sm:$0xff]
      %v746 = vld [vmem:[#allocation2 + $0x58] sm:$0xff]
      %v747 = vld [vmem:[#allocation2 + $0x60] sm:$0xff]
      %v748 = vld [vmem:[#allocation2 + $0x68] sm:$0xff]
      %v749 = vld [vmem:[#allocation2 + $0x70] sm:$0xff]
      %v750 = vld [vmem:[#allocation2 + $0x78] sm:$0xff]
      %v751 = vld [vmem:[#allocation2 + $0x80] sm:$0xff]
      %v752 = vld [vmem:[#allocation2 + $0x88] sm:$0xff]
      %v753 = vld [vmem:[#allocation2 + $0x90] sm:$0xff]
      %v754 = vld [vmem:[#allocation2 + $0x98] sm:$0xff]
      %v755 = vld [vmem:[#allocation2 + $0xa0] sm:$0xff]
      %v756 = vld [vmem:[#allocation2 + $0xa8] sm:$0xff]
      %v757 = vld [vmem:[#allocation2 + $0xb0] sm:$0xff]
      %v758 = vld [vmem:[#allocation2 + $0xb8] sm:$0xff]
      %v759 = vld [vmem:[#allocation2 + $0xc0] sm:$0xff]
      %v760 = vld [vmem:[#allocation2 + $0xc8] sm:$0xff]
      %v761 = vld [vmem:[#allocation2 + $0xd0] sm:$0xff]
      %v762 = vld [vmem:[#allocation2 + $0xd8] sm:$0xff]
      %v763 = vld [vmem:[#allocation2 + $0xe0] sm:$0xff]
      %v764 = vld [vmem:[#allocation2 + $0xe8] sm:$0xff]
      %v765 = vld [vmem:[#allocation2 + $0xf0] sm:$0xff]
      %v766 = vld [vmem:[#allocation2 + $0xf8] sm:$0xff]
      %s767 = scalar_lea.vmem %s2, 64
      %v768 = vld [vmem:[%s767] sm:$0xf]
      %v769 = vld [vmem:[%s767 + $0x4] sm:$0xf]
      %v770 = vld [vmem:[%s767 + $0x8] sm:$0xf]
      %v771 = vld [vmem:[%s767 + $0xc] sm:$0xf]
      %v772 = vld [vmem:[%s767 + $0x10] sm:$0xf]
      %v773 = vld [vmem:[%s767 + $0x14] sm:$0xf]
      %v774 = vld [vmem:[%s767 + $0x18] sm:$0xf]
      %v775 = vld [vmem:[%s767 + $0x1c] sm:$0xf]
      %v776 = vld [vmem:[%s767 + $0x20] sm:$0xf]
      %v777 = vld [vmem:[%s767 + $0x24] sm:$0xf]
      %v778 = vld [vmem:[%s767 + $0x28] sm:$0xf]
      %v779 = vld [vmem:[%s767 + $0x2c] sm:$0xf]
      %v780 = vld [vmem:[%s767 + $0x30] sm:$0xf]
      %v781 = vld [vmem:[%s767 + $0x34] sm:$0xf]
      %v782 = vld [vmem:[%s767 + $0x38] sm:$0xf]
      %v783 = vld [vmem:[%s767 + $0x3c] sm:$0xf]
      %v784 = vpack.c.bf16 %v736, %v735
      %v785 = vpack.c.bf16 %v738, %v737
      %v786 = vpack.c.bf16 %v740, %v739
      %v787 = vpack.c.bf16 %v742, %v741
      %v788 = vpack.c.bf16 %v744, %v743
      %v789 = vpack.c.bf16 %v746, %v745
      %v790 = vpack.c.bf16 %v748, %v747
      %v791 = vpack.c.bf16 %v750, %v749
      %v792 = vpack.c.bf16 %v752, %v751
      %v793 = vpack.c.bf16 %v754, %v753
      %v794 = vpack.c.bf16 %v756, %v755
      %v795 = vpack.c.bf16 %v758, %v757
      %v796 = vpack.c.bf16 %v760, %v759
      %v797 = vpack.c.bf16 %v762, %v761
      %v798 = vpack.c.bf16 %v764, %v763
      %v799 = vpack.c.bf16 %v766, %v765
      %v816 = vunpack.c.l.b16 %v768
      %v817 = vunpack.c.l.b16 %v769
      %v818 = vunpack.c.l.b16 %v770
      %v819 = vunpack.c.l.b16 %v771
      %v820 = vunpack.c.l.b16 %v772
      %v821 = vunpack.c.l.b16 %v773
      %v822 = vunpack.c.l.b16 %v774
      %v823 = vunpack.c.l.b16 %v775
      %v824 = vunpack.c.l.b16 %v776
      %v825 = vunpack.c.l.b16 %v777
      %v826 = vunpack.c.l.b16 %v778
      %v827 = vunpack.c.l.b16 %v779
      %v828 = vunpack.c.l.b16 %v780
      %v829 = vunpack.c.l.b16 %v781
      %v830 = vunpack.c.l.b16 %v782
      %v831 = vunpack.c.l.b16 %v783
      %v832 = vpack.c.b16 %v817, %v816
      %v833 = vpack.c.b16 %v819, %v818
      %v834 = vpack.c.b16 %v821, %v820
      %v835 = vpack.c.b16 %v823, %v822
      %v836 = vpack.c.b16 %v825, %v824
      %v837 = vpack.c.b16 %v827, %v826
      %v838 = vpack.c.b16 %v829, %v828
      %v839 = vpack.c.b16 %v831, %v830
      %848 = vmatpush.bf16.msra.mxu0 %v839
      %849 = vmatpush.bf16.msra.mxu0 %v838
      %850 = vmatpush.bf16.msra.mxu0 %v837
      %851 = vmatpush.bf16.msra.mxu0 %v836
      %852 = vmatpush.bf16.msra.mxu0 %v835
      %853 = vmatpush.bf16.msra.mxu0 %v834
      %854 = vmatpush.bf16.msra.mxu0 %v833
      %855 = vmatpush.bf16.msra.mxu0 %v832
      %856 = vmatmul.bf16.gmra.mxu0 %v784
      %v857 = vpop.f32.mrf.mxu0
      %v858 = vadd.f32 0.0, %v857
      %v859 = vpop.f32.mrf.mxu0
      %v860 = vadd.f32 0.0, %v859
      %861 = vmatmul.bf16.gmra.mxu0 %v785
      %v862 = vpop.f32.mrf.mxu0
      %v863 = vadd.f32 0.0, %v862
      %v864 = vpop.f32.mrf.mxu0
      %v865 = vadd.f32 0.0, %v864
      %866 = vmatmul.bf16.gmra.mxu0 %v786
      %v867 = vpop.f32.mrf.mxu0
      %v868 = vadd.f32 0.0, %v867
      %v869 = vpop.f32.mrf.mxu0
      %v870 = vadd.f32 0.0, %v869
      %871 = vmatmul.bf16.gmra.mxu0 %v787
      %v872 = vpop.f32.mrf.mxu0
      %v873 = vadd.f32 0.0, %v872
      %v874 = vpop.f32.mrf.mxu0
      %v875 = vadd.f32 0.0, %v874
      %876 = vmatmul.bf16.gmra.mxu0 %v788
      %v877 = vpop.f32.mrf.mxu0
      %v878 = vadd.f32 0.0, %v877
      %v879 = vpop.f32.mrf.mxu0
      %v880 = vadd.f32 0.0, %v879
      %881 = vmatmul.bf16.gmra.mxu0 %v789
      %v882 = vpop.f32.mrf.mxu0
      %v883 = vadd.f32 0.0, %v882
      %v884 = vpop.f32.mrf.mxu0
      %v885 = vadd.f32 0.0, %v884
      %886 = vmatmul.bf16.gmra.mxu0 %v790
      %v887 = vpop.f32.mrf.mxu0
      %v888 = vadd.f32 0.0, %v887
      %v889 = vpop.f32.mrf.mxu0
      %v890 = vadd.f32 0.0, %v889
      %891 = vmatmul.bf16.gmra.mxu0 %v791
      %v892 = vpop.f32.mrf.mxu0
      %v893 = vadd.f32 0.0, %v892
      %v894 = vpop.f32.mrf.mxu0
      %v895 = vadd.f32 0.0, %v894
      %896 = vmatmul.bf16.gmra.mxu0 %v792
      %v897 = vpop.f32.mrf.mxu0
      %v898 = vadd.f32 0.0, %v897
      %v899 = vpop.f32.mrf.mxu0
      %v900 = vadd.f32 0.0, %v899
      %901 = vmatmul.bf16.gmra.mxu0 %v793
      %v902 = vpop.f32.mrf.mxu0
      %v903 = vadd.f32 0.0, %v902
      %v904 = vpop.f32.mrf.mxu0
      %v905 = vadd.f32 0.0, %v904
      %906 = vmatmul.bf16.gmra.mxu0 %v794
      %v907 = vpop.f32.mrf.mxu0
      %v908 = vadd.f32 0.0, %v907
      %v909 = vpop.f32.mrf.mxu0
      %v910 = vadd.f32 0.0, %v909
      %911 = vmatmul.bf16.gmra.mxu0 %v795
      %v912 = vpop.f32.mrf.mxu0
      %v913 = vadd.f32 0.0, %v912
      %v914 = vpop.f32.mrf.mxu0
      %v915 = vadd.f32 0.0, %v914
      %916 = vmatmul.bf16.gmra.mxu0 %v796
      %v917 = vpop.f32.mrf.mxu0
      %v918 = vadd.f32 0.0, %v917
      %v919 = vpop.f32.mrf.mxu0
      %v920 = vadd.f32 0.0, %v919
      %921 = vmatmul.bf16.gmra.mxu0 %v797
      %v922 = vpop.f32.mrf.mxu0
      %v923 = vadd.f32 0.0, %v922
      %v924 = vpop.f32.mrf.mxu0
      %v925 = vadd.f32 0.0, %v924
      %926 = vmatmul.bf16.gmra.mxu0 %v798
      %v927 = vpop.f32.mrf.mxu0
      %v928 = vadd.f32 0.0, %v927
      %v929 = vpop.f32.mrf.mxu0
      %v930 = vadd.f32 0.0, %v929
      %931 = vmatmul.bf16.gmra.mxu0 %v799
      %v932 = vpop.f32.mrf.mxu0
      %v933 = vadd.f32 0.0, %v932
      %v934 = vpop.f32.mrf.mxu0
      %v935 = vadd.f32 0.0, %v934
      %936 = vdwg.mxu0
      %v937 = vadd.f32 %v735, %v858
      %v938 = vadd.f32 %v736, %v860
      %v939 = vadd.f32 %v737, %v863
      %v940 = vadd.f32 %v738, %v865
      %v941 = vadd.f32 %v739, %v868
      %v942 = vadd.f32 %v740, %v870
      %v943 = vadd.f32 %v741, %v873
      %v944 = vadd.f32 %v742, %v875
      %v945 = vadd.f32 %v743, %v878
      %v946 = vadd.f32 %v744, %v880
      %v947 = vadd.f32 %v745, %v883
      %v948 = vadd.f32 %v746, %v885
      %v949 = vadd.f32 %v747, %v888
      %v950 = vadd.f32 %v748, %v890
      %v951 = vadd.f32 %v749, %v893
      %v952 = vadd.f32 %v750, %v895
      %v953 = vadd.f32 %v751, %v898
      %v954 = vadd.f32 %v752, %v900
      %v955 = vadd.f32 %v753, %v903
      %v956 = vadd.f32 %v754, %v905
      %v957 = vadd.f32 %v755, %v908
      %v958 = vadd.f32 %v756, %v910
      %v959 = vadd.f32 %v757, %v913
      %v960 = vadd.f32 %v758, %v915
      %v961 = vadd.f32 %v759, %v918
      %v962 = vadd.f32 %v760, %v920
      %v963 = vadd.f32 %v761, %v923
      %v964 = vadd.f32 %v762, %v925
      %v965 = vadd.f32 %v763, %v928
      %v966 = vadd.f32 %v764, %v930
      %v967 = vadd.f32 %v765, %v933
      %v968 = vadd.f32 %v766, %v935
      %969 = vst [vmem:[#allocation2] sm:$0xff] %v937
      %970 = vst [vmem:[#allocation2 + $0x8] sm:$0xff] %v938
      %971 = vst [vmem:[#allocation2 + $0x10] sm:$0xff] %v939
      %972 = vst [vmem:[#allocation2 + $0x18] sm:$0xff] %v940
      %973 = vst [vmem:[#allocation2 + $0x20] sm:$0xff] %v941
      %974 = vst [vmem:[#allocation2 + $0x28] sm:$0xff] %v942
      %975 = vst [vmem:[#allocation2 + $0x30] sm:$0xff] %v943
      %976 = vst [vmem:[#allocation2 + $0x38] sm:$0xff] %v944
      %977 = vst [vmem:[#allocation2 + $0x40] sm:$0xff] %v945
      %978 = vst [vmem:[#allocation2 + $0x48] sm:$0xff] %v946
      %979 = vst [vmem:[#allocation2 + $0x50] sm:$0xff] %v947
      %980 = vst [vmem:[#allocation2 + $0x58] sm:$0xff] %v948
      %981 = vst [vmem:[#allocation2 + $0x60] sm:$0xff] %v949
      %982 = vst [vmem:[#allocation2 + $0x68] sm:$0xff] %v950
      %983 = vst [vmem:[#allocation2 + $0x70] sm:$0xff] %v951
      %984 = vst [vmem:[#allocation2 + $0x78] sm:$0xff] %v952
      %985 = vst [vmem:[#allocation2 + $0x80] sm:$0xff] %v953
      %986 = vst [vmem:[#allocation2 + $0x88] sm:$0xff] %v954
      %987 = vst [vmem:[#allocation2 + $0x90] sm:$0xff] %v955
      %988 = vst [vmem:[#allocation2 + $0x98] sm:$0xff] %v956
      %989 = vst [vmem:[#allocation2 + $0xa0] sm:$0xff] %v957
      %990 = vst [vmem:[#allocation2 + $0xa8] sm:$0xff] %v958
      %991 = vst [vmem:[#allocation2 + $0xb0] sm:$0xff] %v959
      %992 = vst [vmem:[#allocation2 + $0xb8] sm:$0xff] %v960
      %993 = vst [vmem:[#allocation2 + $0xc0] sm:$0xff] %v961
      %994 = vst [vmem:[#allocation2 + $0xc8] sm:$0xff] %v962
      %995 = vst [vmem:[#allocation2 + $0xd0] sm:$0xff] %v963
      %996 = vst [vmem:[#allocation2 + $0xd8] sm:$0xff] %v964
      %997 = vst [vmem:[#allocation2 + $0xe0] sm:$0xff] %v965
      %998 = vst [vmem:[#allocation2 + $0xe8] sm:$0xff] %v966
      %999 = vst [vmem:[#allocation2 + $0xf0] sm:$0xff] %v967
      %1000 = vst [vmem:[#allocation2 + $0xf8] sm:$0xff] %v968
      %v1001 = vld [vmem:[#allocation2] sm:$0xff]
      %v1002 = vld [vmem:[#allocation2 + $0x8] sm:$0xff]
      %v1003 = vld [vmem:[#allocation2 + $0x10] sm:$0xff]
      %v1004 = vld [vmem:[#allocation2 + $0x18] sm:$0xff]
      %v1005 = vld [vmem:[#allocation2 + $0x20] sm:$0xff]
      %v1006 = vld [vmem:[#allocation2 + $0x28] sm:$0xff]
      %v1007 = vld [vmem:[#allocation2 + $0x30] sm:$0xff]
      %v1008 = vld [vmem:[#allocation2 + $0x38] sm:$0xff]
      %v1009 = vld [vmem:[#allocation2 + $0x40] sm:$0xff]
      %v1010 = vld [vmem:[#allocation2 + $0x48] sm:$0xff]
      %v1011 = vld [vmem:[#allocation2 + $0x50] sm:$0xff]
      %v1012 = vld [vmem:[#allocation2 + $0x58] sm:$0xff]
      %v1013 = vld [vmem:[#allocation2 + $0x60] sm:$0xff]
      %v1014 = vld [vmem:[#allocation2 + $0x68] sm:$0xff]
      %v1015 = vld [vmem:[#allocation2 + $0x70] sm:$0xff]
      %v1016 = vld [vmem:[#allocation2 + $0x78] sm:$0xff]
      %v1017 = vld [vmem:[#allocation2 + $0x80] sm:$0xff]
      %v1018 = vld [vmem:[#allocation2 + $0x88] sm:$0xff]
      %v1019 = vld [vmem:[#allocation2 + $0x90] sm:$0xff]
      %v1020 = vld [vmem:[#allocation2 + $0x98] sm:$0xff]
      %v1021 = vld [vmem:[#allocation2 + $0xa0] sm:$0xff]
      %v1022 = vld [vmem:[#allocation2 + $0xa8] sm:$0xff]
      %v1023 = vld [vmem:[#allocation2 + $0xb0] sm:$0xff]
      %v1024 = vld [vmem:[#allocation2 + $0xb8] sm:$0xff]
      %v1025 = vld [vmem:[#allocation2 + $0xc0] sm:$0xff]
      %v1026 = vld [vmem:[#allocation2 + $0xc8] sm:$0xff]
      %v1027 = vld [vmem:[#allocation2 + $0xd0] sm:$0xff]
      %v1028 = vld [vmem:[#allocation2 + $0xd8] sm:$0xff]
      %v1029 = vld [vmem:[#allocation2 + $0xe0] sm:$0xff]
      %v1030 = vld [vmem:[#allocation2 + $0xe8] sm:$0xff]
      %v1031 = vld [vmem:[#allocation2 + $0xf0] sm:$0xff]
      %v1032 = vld [vmem:[#allocation2 + $0xf8] sm:$0xff]
      %s1033 = scalar_lea.vmem %s2, 128
      %v1034 = vld [vmem:[%s1033] sm:$0xf]
      %v1035 = vld [vmem:[%s1033 + $0x4] sm:$0xf]
      %v1036 = vld [vmem:[%s1033 + $0x8] sm:$0xf]
      %v1037 = vld [vmem:[%s1033 + $0xc] sm:$0xf]
      %v1038 = vld [vmem:[%s1033 + $0x10] sm:$0xf]
      %v1039 = vld [vmem:[%s1033 + $0x14] sm:$0xf]
      %v1040 = vld [vmem:[%s1033 + $0x18] sm:$0xf]
      %v1041 = vld [vmem:[%s1033 + $0x1c] sm:$0xf]
      %v1042 = vld [vmem:[%s1033 + $0x20] sm:$0xf]
      %v1043 = vld [vmem:[%s1033 + $0x24] sm:$0xf]
      %v1044 = vld [vmem:[%s1033 + $0x28] sm:$0xf]
      %v1045 = vld [vmem:[%s1033 + $0x2c] sm:$0xf]
      %v1046 = vld [vmem:[%s1033 + $0x30] sm:$0xf]
      %v1047 = vld [vmem:[%s1033 + $0x34] sm:$0xf]
      %v1048 = vld [vmem:[%s1033 + $0x38] sm:$0xf]
      %v1049 = vld [vmem:[%s1033 + $0x3c] sm:$0xf]
      %v1050 = vpack.c.bf16 %v1002, %v1001
      %v1051 = vpack.c.bf16 %v1004, %v1003
      %v1052 = vpack.c.bf16 %v1006, %v1005
      %v1053 = vpack.c.bf16 %v1008, %v1007
      %v1054 = vpack.c.bf16 %v1010, %v1009
      %v1055 = vpack.c.bf16 %v1012, %v1011
      %v1056 = vpack.c.bf16 %v1014, %v1013
      %v1057 = vpack.c.bf16 %v1016, %v1015
      %v1058 = vpack.c.bf16 %v1018, %v1017
      %v1059 = vpack.c.bf16 %v1020, %v1019
      %v1060 = vpack.c.bf16 %v1022, %v1021
      %v1061 = vpack.c.bf16 %v1024, %v1023
      %v1062 = vpack.c.bf16 %v1026, %v1025
      %v1063 = vpack.c.bf16 %v1028, %v1027
      %v1064 = vpack.c.bf16 %v1030, %v1029
      %v1065 = vpack.c.bf16 %v1032, %v1031
      %v1082 = vunpack.c.l.b16 %v1034
      %v1083 = vunpack.c.l.b16 %v1035
      %v1084 = vunpack.c.l.b16 %v1036
      %v1085 = vunpack.c.l.b16 %v1037
      %v1086 = vunpack.c.l.b16 %v1038
      %v1087 = vunpack.c.l.b16 %v1039
      %v1088 = vunpack.c.l.b16 %v1040
      %v1089 = vunpack.c.l.b16 %v1041
      %v1090 = vunpack.c.l.b16 %v1042
      %v1091 = vunpack.c.l.b16 %v1043
      %v1092 = vunpack.c.l.b16 %v1044
      %v1093 = vunpack.c.l.b16 %v1045
      %v1094 = vunpack.c.l.b16 %v1046
      %v1095 = vunpack.c.l.b16 %v1047
      %v1096 = vunpack.c.l.b16 %v1048
      %v1097 = vunpack.c.l.b16 %v1049
      %v1098 = vpack.c.b16 %v1083, %v1082
      %v1099 = vpack.c.b16 %v1085, %v1084
      %v1100 = vpack.c.b16 %v1087, %v1086
      %v1101 = vpack.c.b16 %v1089, %v1088
      %v1102 = vpack.c.b16 %v1091, %v1090
      %v1103 = vpack.c.b16 %v1093, %v1092
      %v1104 = vpack.c.b16 %v1095, %v1094
      %v1105 = vpack.c.b16 %v1097, %v1096
      %1114 = vmatpush.bf16.msra.mxu0 %v1105
      %1115 = vmatpush.bf16.msra.mxu0 %v1104
      %1116 = vmatpush.bf16.msra.mxu0 %v1103
      %1117 = vmatpush.bf16.msra.mxu0 %v1102
      %1118 = vmatpush.bf16.msra.mxu0 %v1101
      %1119 = vmatpush.bf16.msra.mxu0 %v1100
      %1120 = vmatpush.bf16.msra.mxu0 %v1099
      %1121 = vmatpush.bf16.msra.mxu0 %v1098
      %1122 = vmatmul.bf16.gmra.mxu0 %v1050
      %v1123 = vpop.f32.mrf.mxu0
      %v1124 = vadd.f32 0.0, %v1123
      %v1125 = vpop.f32.mrf.mxu0
      %v1126 = vadd.f32 0.0, %v1125
      %1127 = vmatmul.bf16.gmra.mxu0 %v1051
      %v1128 = vpop.f32.mrf.mxu0
      %v1129 = vadd.f32 0.0, %v1128
      %v1130 = vpop.f32.mrf.mxu0
      %v1131 = vadd.f32 0.0, %v1130
      %1132 = vmatmul.bf16.gmra.mxu0 %v1052
      %v1133 = vpop.f32.mrf.mxu0
      %v1134 = vadd.f32 0.0, %v1133
      %v1135 = vpop.f32.mrf.mxu0
      %v1136 = vadd.f32 0.0, %v1135
      %1137 = vmatmul.bf16.gmra.mxu0 %v1053
      %v1138 = vpop.f32.mrf.mxu0
      %v1139 = vadd.f32 0.0, %v1138
      %v1140 = vpop.f32.mrf.mxu0
      %v1141 = vadd.f32 0.0, %v1140
      %1142 = vmatmul.bf16.gmra.mxu0 %v1054
      %v1143 = vpop.f32.mrf.mxu0
      %v1144 = vadd.f32 0.0, %v1143
      %v1145 = vpop.f32.mrf.mxu0
      %v1146 = vadd.f32 0.0, %v1145
      %1147 = vmatmul.bf16.gmra.mxu0 %v1055
      %v1148 = vpop.f32.mrf.mxu0
      %v1149 = vadd.f32 0.0, %v1148
      %v1150 = vpop.f32.mrf.mxu0
      %v1151 = vadd.f32 0.0, %v1150
      %1152 = vmatmul.bf16.gmra.mxu0 %v1056
      %v1153 = vpop.f32.mrf.mxu0
      %v1154 = vadd.f32 0.0, %v1153
      %v1155 = vpop.f32.mrf.mxu0
      %v1156 = vadd.f32 0.0, %v1155
      %1157 = vmatmul.bf16.gmra.mxu0 %v1057
      %v1158 = vpop.f32.mrf.mxu0
      %v1159 = vadd.f32 0.0, %v1158
      %v1160 = vpop.f32.mrf.mxu0
      %v1161 = vadd.f32 0.0, %v1160
      %1162 = vmatmul.bf16.gmra.mxu0 %v1058
      %v1163 = vpop.f32.mrf.mxu0
      %v1164 = vadd.f32 0.0, %v1163
      %v1165 = vpop.f32.mrf.mxu0
      %v1166 = vadd.f32 0.0, %v1165
      %1167 = vmatmul.bf16.gmra.mxu0 %v1059
      %v1168 = vpop.f32.mrf.mxu0
      %v1169 = vadd.f32 0.0, %v1168
      %v1170 = vpop.f32.mrf.mxu0
      %v1171 = vadd.f32 0.0, %v1170
      %1172 = vmatmul.bf16.gmra.mxu0 %v1060
      %v1173 = vpop.f32.mrf.mxu0
      %v1174 = vadd.f32 0.0, %v1173
      %v1175 = vpop.f32.mrf.mxu0
      %v1176 = vadd.f32 0.0, %v1175
      %1177 = vmatmul.bf16.gmra.mxu0 %v1061
      %v1178 = vpop.f32.mrf.mxu0
      %v1179 = vadd.f32 0.0, %v1178
      %v1180 = vpop.f32.mrf.mxu0
      %v1181 = vadd.f32 0.0, %v1180
      %1182 = vmatmul.bf16.gmra.mxu0 %v1062
      %v1183 = vpop.f32.mrf.mxu0
      %v1184 = vadd.f32 0.0, %v1183
      %v1185 = vpop.f32.mrf.mxu0
      %v1186 = vadd.f32 0.0, %v1185
      %1187 = vmatmul.bf16.gmra.mxu0 %v1063
      %v1188 = vpop.f32.mrf.mxu0
      %v1189 = vadd.f32 0.0, %v1188
      %v1190 = vpop.f32.mrf.mxu0
      %v1191 = vadd.f32 0.0, %v1190
      %1192 = vmatmul.bf16.gmra.mxu0 %v1064
      %v1193 = vpop.f32.mrf.mxu0
      %v1194 = vadd.f32 0.0, %v1193
      %v1195 = vpop.f32.mrf.mxu0
      %v1196 = vadd.f32 0.0, %v1195
      %1197 = vmatmul.bf16.gmra.mxu0 %v1065
      %v1198 = vpop.f32.mrf.mxu0
      %v1199 = vadd.f32 0.0, %v1198
      %v1200 = vpop.f32.mrf.mxu0
      %v1201 = vadd.f32 0.0, %v1200
      %1202 = vdwg.mxu0
      %v1203 = vadd.f32 %v1001, %v1124
      %v1204 = vadd.f32 %v1002, %v1126
      %v1205 = vadd.f32 %v1003, %v1129
      %v1206 = vadd.f32 %v1004, %v1131
      %v1207 = vadd.f32 %v1005, %v1134
      %v1208 = vadd.f32 %v1006, %v1136
      %v1209 = vadd.f32 %v1007, %v1139
      %v1210 = vadd.f32 %v1008, %v1141
      %v1211 = vadd.f32 %v1009, %v1144
      %v1212 = vadd.f32 %v1010, %v1146
      %v1213 = vadd.f32 %v1011, %v1149
      %v1214 = vadd.f32 %v1012, %v1151
      %v1215 = vadd.f32 %v1013, %v1154
      %v1216 = vadd.f32 %v1014, %v1156
      %v1217 = vadd.f32 %v1015, %v1159
      %v1218 = vadd.f32 %v1016, %v1161
      %v1219 = vadd.f32 %v1017, %v1164
      %v1220 = vadd.f32 %v1018, %v1166
      %v1221 = vadd.f32 %v1019, %v1169
      %v1222 = vadd.f32 %v1020, %v1171
      %v1223 = vadd.f32 %v1021, %v1174
      %v1224 = vadd.f32 %v1022, %v1176
      %v1225 = vadd.f32 %v1023, %v1179
      %v1226 = vadd.f32 %v1024, %v1181
      %v1227 = vadd.f32 %v1025, %v1184
      %v1228 = vadd.f32 %v1026, %v1186
      %v1229 = vadd.f32 %v1027, %v1189
      %v1230 = vadd.f32 %v1028, %v1191
      %v1231 = vadd.f32 %v1029, %v1194
      %v1232 = vadd.f32 %v1030, %v1196
      %v1233 = vadd.f32 %v1031, %v1199
      %v1234 = vadd.f32 %v1032, %v1201
      %1235 = vst [vmem:[#allocation2] sm:$0xff] %v1203
      %1236 = vst [vmem:[#allocation2 + $0x8] sm:$0xff] %v1204
      %1237 = vst [vmem:[#allocation2 + $0x10] sm:$0xff] %v1205
      %1238 = vst [vmem:[#allocation2 + $0x18] sm:$0xff] %v1206
      %1239 = vst [vmem:[#allocation2 + $0x20] sm:$0xff] %v1207
      %1240 = vst [vmem:[#allocation2 + $0x28] sm:$0xff] %v1208
      %1241 = vst [vmem:[#allocation2 + $0x30] sm:$0xff] %v1209
      %1242 = vst [vmem:[#allocation2 + $0x38] sm:$0xff] %v1210
      %1243 = vst [vmem:[#allocation2 + $0x40] sm:$0xff] %v1211
      %1244 = vst [vmem:[#allocation2 + $0x48] sm:$0xff] %v1212
      %1245 = vst [vmem:[#allocation2 + $0x50] sm:$0xff] %v1213
      %1246 = vst [vmem:[#allocation2 + $0x58] sm:$0xff] %v1214
      %1247 = vst [vmem:[#allocation2 + $0x60] sm:$0xff] %v1215
      %1248 = vst [vmem:[#allocation2 + $0x68] sm:$0xff] %v1216
      %1249 = vst [vmem:[#allocation2 + $0x70] sm:$0xff] %v1217
      %1250 = vst [vmem:[#allocation2 + $0x78] sm:$0xff] %v1218
      %1251 = vst [vmem:[#allocation2 + $0x80] sm:$0xff] %v1219
      %1252 = vst [vmem:[#allocation2 + $0x88] sm:$0xff] %v1220
      %1253 = vst [vmem:[#allocation2 + $0x90] sm:$0xff] %v1221
      %1254 = vst [vmem:[#allocation2 + $0x98] sm:$0xff] %v1222
      %1255 = vst [vmem:[#allocation2 + $0xa0] sm:$0xff] %v1223
      %1256 = vst [vmem:[#allocation2 + $0xa8] sm:$0xff] %v1224
      %1257 = vst [vmem:[#allocation2 + $0xb0] sm:$0xff] %v1225
      %1258 = vst [vmem:[#allocation2 + $0xb8] sm:$0xff] %v1226
      %1259 = vst [vmem:[#allocation2 + $0xc0] sm:$0xff] %v1227
      %1260 = vst [vmem:[#allocation2 + $0xc8] sm:$0xff] %v1228
      %1261 = vst [vmem:[#allocation2 + $0xd0] sm:$0xff] %v1229
      %1262 = vst [vmem:[#allocation2 + $0xd8] sm:$0xff] %v1230
      %1263 = vst [vmem:[#allocation2 + $0xe0] sm:$0xff] %v1231
      %1264 = vst [vmem:[#allocation2 + $0xe8] sm:$0xff] %v1232
      %1265 = vst [vmem:[#allocation2 + $0xf0] sm:$0xff] %v1233
      %1266 = vst [vmem:[#allocation2 + $0xf8] sm:$0xff] %v1234
      %v1267 = vld [vmem:[#allocation2] sm:$0xff]
      %v1268 = vld [vmem:[#allocation2 + $0x8] sm:$0xff]
      %v1269 = vld [vmem:[#allocation2 + $0x10] sm:$0xff]
      %v1270 = vld [vmem:[#allocation2 + $0x18] sm:$0xff]
      %v1271 = vld [vmem:[#allocation2 + $0x20] sm:$0xff]
      %v1272 = vld [vmem:[#allocation2 + $0x28] sm:$0xff]
      %v1273 = vld [vmem:[#allocation2 + $0x30] sm:$0xff]
      %v1274 = vld [vmem:[#allocation2 + $0x38] sm:$0xff]
      %s1275 = scalar_lea.vmem %s2, 192
      %v1276 = vld [vmem:[%s1275] sm:$0xf]
      %v1277 = vld [vmem:[%s1275 + $0x4] sm:$0xf]
      %v1278 = vld [vmem:[%s1275 + $0x8] sm:$0xf]
      %v1279 = vld [vmem:[%s1275 + $0xc] sm:$0xf]
      %v1280 = vld [vmem:[%s1275 + $0x10] sm:$0xf]
      %v1281 = vld [vmem:[%s1275 + $0x14] sm:$0xf]
      %v1282 = vld [vmem:[%s1275 + $0x18] sm:$0xf]
      %v1283 = vld [vmem:[%s1275 + $0x1c] sm:$0xf]
      %v1284 = vld [vmem:[%s1275 + $0x20] sm:$0xf]
      %v1285 = vld [vmem:[%s1275 + $0x24] sm:$0xf]
      %v1286 = vld [vmem:[%s1275 + $0x28] sm:$0xf]
      %v1287 = vld [vmem:[%s1275 + $0x2c] sm:$0xf]
      %v1288 = vld [vmem:[%s1275 + $0x30] sm:$0xf]
      %v1289 = vld [vmem:[%s1275 + $0x34] sm:$0xf]
      %v1290 = vld [vmem:[%s1275 + $0x38] sm:$0xf]
      %v1291 = vld [vmem:[%s1275 + $0x3c] sm:$0xf]
      %v1292 = vpack.c.bf16 %v1268, %v1267
      %v1293 = vpack.c.bf16 %v1270, %v1269
      %v1294 = vpack.c.bf16 %v1272, %v1271
      %v1295 = vpack.c.bf16 %v1274, %v1273
      %v1312 = vunpack.c.l.b16 %v1276
      %v1313 = vunpack.c.l.b16 %v1277
      %v1314 = vunpack.c.l.b16 %v1278
      %v1315 = vunpack.c.l.b16 %v1279
      %v1316 = vunpack.c.l.b16 %v1280
      %v1317 = vunpack.c.l.b16 %v1281
      %v1318 = vunpack.c.l.b16 %v1282
      %v1319 = vunpack.c.l.b16 %v1283
      %v1320 = vunpack.c.l.b16 %v1284
      %v1321 = vunpack.c.l.b16 %v1285
      %v1322 = vunpack.c.l.b16 %v1286
      %v1323 = vunpack.c.l.b16 %v1287
      %v1324 = vunpack.c.l.b16 %v1288
      %v1325 = vunpack.c.l.b16 %v1289
      %v1326 = vunpack.c.l.b16 %v1290
      %v1327 = vunpack.c.l.b16 %v1291
      %v1328 = vpack.c.b16 %v1313, %v1312
      %v1329 = vpack.c.b16 %v1315, %v1314
      %v1330 = vpack.c.b16 %v1317, %v1316
      %v1331 = vpack.c.b16 %v1319, %v1318
      %v1332 = vpack.c.b16 %v1321, %v1320
      %v1333 = vpack.c.b16 %v1323, %v1322
      %v1334 = vpack.c.b16 %v1325, %v1324
      %v1335 = vpack.c.b16 %v1327, %v1326
      %1344 = vmatpush.bf16.msra.mxu0 %v1335
      %1345 = vmatpush.bf16.msra.mxu0 %v1334
      %1346 = vmatpush.bf16.msra.mxu0 %v1333
      %1347 = vmatpush.bf16.msra.mxu0 %v1332
      %1348 = vmatpush.bf16.msra.mxu0 %v1331
      %1349 = vmatpush.bf16.msra.mxu0 %v1330
      %1350 = vmatpush.bf16.msra.mxu0 %v1329
      %1351 = vmatpush.bf16.msra.mxu0 %v1328
      %1352 = vmatmul.bf16.gmra.mxu0 %v1292
      %v1353 = vpop.f32.mrf.mxu0
      %v1354 = vadd.f32 0.0, %v1353
      %v1355 = vpop.f32.mrf.mxu0
      %v1356 = vadd.f32 0.0, %v1355
      %1357 = vmatmul.bf16.gmra.mxu0 %v1293
      %v1358 = vpop.f32.mrf.mxu0
      %v1359 = vadd.f32 0.0, %v1358
      %v1360 = vpop.f32.mrf.mxu0
      %v1361 = vadd.f32 0.0, %v1360
      %1362 = vmatmul.bf16.gmra.mxu0 %v1294
      %v1363 = vpop.f32.mrf.mxu0
      %v1364 = vadd.f32 0.0, %v1363
      %v1365 = vpop.f32.mrf.mxu0
      %v1366 = vadd.f32 0.0, %v1365
      %1367 = vmatmul.bf16.gmra.mxu0 %v1295
      %v1368 = vpop.f32.mrf.mxu0
      %v1369 = vadd.f32 0.0, %v1368
      %v1370 = vpop.f32.mrf.mxu0
      %v1371 = vadd.f32 0.0, %v1370
      %1372 = vdwg.mxu0
      %1373 = vst [vmem:[%s170] sm:$0xff] %v1354
      %1374 = vst [vmem:[%s170 + $0x8] sm:$0xff] %v1356
      %1375 = vst [vmem:[%s170 + $0x10] sm:$0xff] %v1359
      %1376 = vst [vmem:[%s170 + $0x18] sm:$0xff] %v1361
      %1377 = vst [vmem:[%s170 + $0x20] sm:$0xff] %v1364
      %1378 = vst [vmem:[%s170 + $0x28] sm:$0xff] %v1366
      %1379 = vst [vmem:[%s170 + $0x30] sm:$0xff] %v1369
      %1380 = vst [vmem:[%s170 + $0x38] sm:$0xff] %v1371
      %v1381 = vld [vmem:[%s170] sm:$0xff]
      %v1382 = vld [vmem:[%s170 + $0x8] sm:$0xff]
      %v1383 = vld [vmem:[%s170 + $0x10] sm:$0xff]
      %v1384 = vld [vmem:[%s170 + $0x18] sm:$0xff]
      %v1385 = vld [vmem:[%s170 + $0x20] sm:$0xff]
      %v1386 = vld [vmem:[%s170 + $0x28] sm:$0xff]
      %v1387 = vld [vmem:[%s170 + $0x30] sm:$0xff]
      %v1388 = vld [vmem:[%s170 + $0x38] sm:$0xff]
      %s1389 = scalar_lea.vmem %s2, 256
      %v1390 = vld [vmem:[%s1389] sm:$0xf]
      %v1391 = vld [vmem:[%s1389 + $0x4] sm:$0xf]
      %v1392 = vld [vmem:[%s1389 + $0x8] sm:$0xf]
      %v1393 = vld [vmem:[%s1389 + $0xc] sm:$0xf]
      %v1394 = vld [vmem:[%s1389 + $0x10] sm:$0xf]
      %v1395 = vld [vmem:[%s1389 + $0x14] sm:$0xf]
      %v1396 = vld [vmem:[%s1389 + $0x18] sm:$0xf]
      %v1397 = vld [vmem:[%s1389 + $0x1c] sm:$0xf]
      %v1398 = vld [vmem:[%s1389 + $0x20] sm:$0xf]
      %v1399 = vld [vmem:[%s1389 + $0x24] sm:$0xf]
      %v1400 = vld [vmem:[%s1389 + $0x28] sm:$0xf]
      %v1401 = vld [vmem:[%s1389 + $0x2c] sm:$0xf]
      %v1402 = vld [vmem:[%s1389 + $0x30] sm:$0xf]
      %v1403 = vld [vmem:[%s1389 + $0x34] sm:$0xf]
      %v1404 = vld [vmem:[%s1389 + $0x38] sm:$0xf]
      %v1405 = vld [vmem:[%s1389 + $0x3c] sm:$0xf]
      %v1406 = vpack.c.bf16 %v1382, %v1381
      %v1407 = vpack.c.bf16 %v1384, %v1383
      %v1408 = vpack.c.bf16 %v1386, %v1385
      %v1409 = vpack.c.bf16 %v1388, %v1387
      %v1426 = vunpack.c.l.b16 %v1390
      %v1427 = vunpack.c.l.b16 %v1391
      %v1428 = vunpack.c.l.b16 %v1392
      %v1429 = vunpack.c.l.b16 %v1393
      %v1430 = vunpack.c.l.b16 %v1394
      %v1431 = vunpack.c.l.b16 %v1395
      %v1432 = vunpack.c.l.b16 %v1396
      %v1433 = vunpack.c.l.b16 %v1397
      %v1434 = vunpack.c.l.b16 %v1398
      %v1435 = vunpack.c.l.b16 %v1399
      %v1436 = vunpack.c.l.b16 %v1400
      %v1437 = vunpack.c.l.b16 %v1401
      %v1438 = vunpack.c.l.b16 %v1402
      %v1439 = vunpack.c.l.b16 %v1403
      %v1440 = vunpack.c.l.b16 %v1404
      %v1441 = vunpack.c.l.b16 %v1405
      %v1442 = vpack.c.b16 %v1427, %v1426
      %v1443 = vpack.c.b16 %v1429, %v1428
      %v1444 = vpack.c.b16 %v1431, %v1430
      %v1445 = vpack.c.b16 %v1433, %v1432
      %v1446 = vpack.c.b16 %v1435, %v1434
      %v1447 = vpack.c.b16 %v1437, %v1436
      %v1448 = vpack.c.b16 %v1439, %v1438
      %v1449 = vpack.c.b16 %v1441, %v1440
      %1458 = vmatpush.bf16.msra.mxu0 %v1449
      %1459 = vmatpush.bf16.msra.mxu0 %v1448
      %1460 = vmatpush.bf16.msra.mxu0 %v1447
      %1461 = vmatpush.bf16.msra.mxu0 %v1446
      %1462 = vmatpush.bf16.msra.mxu0 %v1445
      %1463 = vmatpush.bf16.msra.mxu0 %v1444
      %1464 = vmatpush.bf16.msra.mxu0 %v1443
      %1465 = vmatpush.bf16.msra.mxu0 %v1442
      %1466 = vmatmul.bf16.gmra.mxu0 %v1406
      %v1467 = vpop.f32.mrf.mxu0
      %v1468 = vadd.f32 0.0, %v1467
      %v1469 = vpop.f32.mrf.mxu0
      %v1470 = vadd.f32 0.0, %v1469
      %1471 = vmatmul.bf16.gmra.mxu0 %v1407
      %v1472 = vpop.f32.mrf.mxu0
      %v1473 = vadd.f32 0.0, %v1472
      %v1474 = vpop.f32.mrf.mxu0
      %v1475 = vadd.f32 0.0, %v1474
      %1476 = vmatmul.bf16.gmra.mxu0 %v1408
      %v1477 = vpop.f32.mrf.mxu0
      %v1478 = vadd.f32 0.0, %v1477
      %v1479 = vpop.f32.mrf.mxu0
      %v1480 = vadd.f32 0.0, %v1479
      %1481 = vmatmul.bf16.gmra.mxu0 %v1409
      %v1482 = vpop.f32.mrf.mxu0
      %v1483 = vadd.f32 0.0, %v1482
      %v1484 = vpop.f32.mrf.mxu0
      %v1485 = vadd.f32 0.0, %v1484
      %1486 = vdwg.mxu0
      %v1487 = vadd.f32 %v1381, %v1468
      %v1488 = vadd.f32 %v1382, %v1470
      %v1489 = vadd.f32 %v1383, %v1473
      %v1490 = vadd.f32 %v1384, %v1475
      %v1491 = vadd.f32 %v1385, %v1478
      %v1492 = vadd.f32 %v1386, %v1480
      %v1493 = vadd.f32 %v1387, %v1483
      %v1494 = vadd.f32 %v1388, %v1485
      %1495 = vst [vmem:[%s170] sm:$0xff] %v1487
      %1496 = vst [vmem:[%s170 + $0x8] sm:$0xff] %v1488
      %1497 = vst [vmem:[%s170 + $0x10] sm:$0xff] %v1489
      %1498 = vst [vmem:[%s170 + $0x18] sm:$0xff] %v1490
      %1499 = vst [vmem:[%s170 + $0x20] sm:$0xff] %v1491
      %1500 = vst [vmem:[%s170 + $0x28] sm:$0xff] %v1492
      %1501 = vst [vmem:[%s170 + $0x30] sm:$0xff] %v1493
      %1502 = vst [vmem:[%s170 + $0x38] sm:$0xff] %v1494
      %v1503 = vld [vmem:[%s170] sm:$0xff]
      %v1504 = vld [vmem:[%s170 + $0x8] sm:$0xff]
      %v1505 = vld [vmem:[%s170 + $0x10] sm:$0xff]
      %v1506 = vld [vmem:[%s170 + $0x18] sm:$0xff]
      %v1507 = vld [vmem:[%s170 + $0x20] sm:$0xff]
      %v1508 = vld [vmem:[%s170 + $0x28] sm:$0xff]
      %v1509 = vld [vmem:[%s170 + $0x30] sm:$0xff]
      %v1510 = vld [vmem:[%s170 + $0x38] sm:$0xff]
      %s1511 = scalar_lea.vmem %s2, 320
      %v1512 = vld [vmem:[%s1511] sm:$0xf]
      %v1513 = vld [vmem:[%s1511 + $0x4] sm:$0xf]
      %v1514 = vld [vmem:[%s1511 + $0x8] sm:$0xf]
      %v1515 = vld [vmem:[%s1511 + $0xc] sm:$0xf]
      %v1516 = vld [vmem:[%s1511 + $0x10] sm:$0xf]
      %v1517 = vld [vmem:[%s1511 + $0x14] sm:$0xf]
      %v1518 = vld [vmem:[%s1511 + $0x18] sm:$0xf]
      %v1519 = vld [vmem:[%s1511 + $0x1c] sm:$0xf]
      %v1520 = vld [vmem:[%s1511 + $0x20] sm:$0xf]
      %v1521 = vld [vmem:[%s1511 + $0x24] sm:$0xf]
      %v1522 = vld [vmem:[%s1511 + $0x28] sm:$0xf]
      %v1523 = vld [vmem:[%s1511 + $0x2c] sm:$0xf]
      %v1524 = vld [vmem:[%s1511 + $0x30] sm:$0xf]
      %v1525 = vld [vmem:[%s1511 + $0x34] sm:$0xf]
      %v1526 = vld [vmem:[%s1511 + $0x38] sm:$0xf]
      %v1527 = vld [vmem:[%s1511 + $0x3c] sm:$0xf]
      %v1528 = vpack.c.bf16 %v1504, %v1503
      %v1529 = vpack.c.bf16 %v1506, %v1505
      %v1530 = vpack.c.bf16 %v1508, %v1507
      %v1531 = vpack.c.bf16 %v1510, %v1509
      %v1548 = vunpack.c.l.b16 %v1512
      %v1549 = vunpack.c.l.b16 %v1513
      %v1550 = vunpack.c.l.b16 %v1514
      %v1551 = vunpack.c.l.b16 %v1515
      %v1552 = vunpack.c.l.b16 %v1516
      %v1553 = vunpack.c.l.b16 %v1517
      %v1554 = vunpack.c.l.b16 %v1518
      %v1555 = vunpack.c.l.b16 %v1519
      %v1556 = vunpack.c.l.b16 %v1520
      %v1557 = vunpack.c.l.b16 %v1521
      %v1558 = vunpack.c.l.b16 %v1522
      %v1559 = vunpack.c.l.b16 %v1523
      %v1560 = vunpack.c.l.b16 %v1524
      %v1561 = vunpack.c.l.b16 %v1525
      %v1562 = vunpack.c.l.b16 %v1526
      %v1563 = vunpack.c.l.b16 %v1527
      %v1564 = vpack.c.b16 %v1549, %v1548
      %v1565 = vpack.c.b16 %v1551, %v1550
      %v1566 = vpack.c.b16 %v1553, %v1552
      %v1567 = vpack.c.b16 %v1555, %v1554
      %v1568 = vpack.c.b16 %v1557, %v1556
      %v1569 = vpack.c.b16 %v1559, %v1558
      %v1570 = vpack.c.b16 %v1561, %v1560
      %v1571 = vpack.c.b16 %v1563, %v1562
      %1580 = vmatpush.bf16.msra.mxu0 %v1571
      %1581 = vmatpush.bf16.msra.mxu0 %v1570
      %1582 = vmatpush.bf16.msra.mxu0 %v1569
      %1583 = vmatpush.bf16.msra.mxu0 %v1568
      %1584 = vmatpush.bf16.msra.mxu0 %v1567
      %1585 = vmatpush.bf16.msra.mxu0 %v1566
      %1586 = vmatpush.bf16.msra.mxu0 %v1565
      %1587 = vmatpush.bf16.msra.mxu0 %v1564
      %1588 = vmatmul.bf16.gmra.mxu0 %v1528
      %v1589 = vpop.f32.mrf.mxu0
      %v1590 = vadd.f32 0.0, %v1589
      %v1591 = vpop.f32.mrf.mxu0
      %v1592 = vadd.f32 0.0, %v1591
      %1593 = vmatmul.bf16.gmra.mxu0 %v1529
      %v1594 = vpop.f32.mrf.mxu0
      %v1595 = vadd.f32 0.0, %v1594
      %v1596 = vpop.f32.mrf.mxu0
      %v1597 = vadd.f32 0.0, %v1596
      %1598 = vmatmul.bf16.gmra.mxu0 %v1530
      %v1599 = vpop.f32.mrf.mxu0
      %v1600 = vadd.f32 0.0, %v1599
      %v1601 = vpop.f32.mrf.mxu0
      %v1602 = vadd.f32 0.0, %v1601
      %1603 = vmatmul.bf16.gmra.mxu0 %v1531
      %v1604 = vpop.f32.mrf.mxu0
      %v1605 = vadd.f32 0.0, %v1604
      %v1606 = vpop.f32.mrf.mxu0
      %v1607 = vadd.f32 0.0, %v1606
      %1608 = vdwg.mxu0
      %v1609 = vadd.f32 %v1503, %v1590
      %v1610 = vadd.f32 %v1504, %v1592
      %v1611 = vadd.f32 %v1505, %v1595
      %v1612 = vadd.f32 %v1506, %v1597
      %v1613 = vadd.f32 %v1507, %v1600
      %v1614 = vadd.f32 %v1508, %v1602
      %v1615 = vadd.f32 %v1509, %v1605
      %v1616 = vadd.f32 %v1510, %v1607
      %1617 = vst [vmem:[%s170] sm:$0xff] %v1609
      %1618 = vst [vmem:[%s170 + $0x8] sm:$0xff] %v1610
      %1619 = vst [vmem:[%s170 + $0x10] sm:$0xff] %v1611
      %1620 = vst [vmem:[%s170 + $0x18] sm:$0xff] %v1612
      %1621 = vst [vmem:[%s170 + $0x20] sm:$0xff] %v1613
      %1622 = vst [vmem:[%s170 + $0x28] sm:$0xff] %v1614
      %1623 = vst [vmem:[%s170 + $0x30] sm:$0xff] %v1615
      %1624 = vst [vmem:[%s170 + $0x38] sm:$0xff] %v1616
      %v1625 = vld [vmem:[%s170] sm:$0xff]
      %v1626 = vld [vmem:[%s170 + $0x8] sm:$0xff]
      %v1627 = vld [vmem:[%s170 + $0x10] sm:$0xff]
      %v1628 = vld [vmem:[%s170 + $0x18] sm:$0xff]
      %v1629 = vld [vmem:[%s170 + $0x20] sm:$0xff]
      %v1630 = vld [vmem:[%s170 + $0x28] sm:$0xff]
      %v1631 = vld [vmem:[%s170 + $0x30] sm:$0xff]
      %v1632 = vld [vmem:[%s170 + $0x38] sm:$0xff]
      %s1633 = scalar_lea.vmem %s2, 384
      %v1634 = vld [vmem:[%s1633] sm:$0xf]
      %v1635 = vld [vmem:[%s1633 + $0x4] sm:$0xf]
      %v1636 = vld [vmem:[%s1633 + $0x8] sm:$0xf]
      %v1637 = vld [vmem:[%s1633 + $0xc] sm:$0xf]
      %v1638 = vld [vmem:[%s1633 + $0x10] sm:$0xf]
      %v1639 = vld [vmem:[%s1633 + $0x14] sm:$0xf]
      %v1640 = vld [vmem:[%s1633 + $0x18] sm:$0xf]
      %v1641 = vld [vmem:[%s1633 + $0x1c] sm:$0xf]
      %v1642 = vld [vmem:[%s1633 + $0x20] sm:$0xf]
      %v1643 = vld [vmem:[%s1633 + $0x24] sm:$0xf]
      %v1644 = vld [vmem:[%s1633 + $0x28] sm:$0xf]
      %v1645 = vld [vmem:[%s1633 + $0x2c] sm:$0xf]
      %v1646 = vld [vmem:[%s1633 + $0x30] sm:$0xf]
      %v1647 = vld [vmem:[%s1633 + $0x34] sm:$0xf]
      %v1648 = vld [vmem:[%s1633 + $0x38] sm:$0xf]
      %v1649 = vld [vmem:[%s1633 + $0x3c] sm:$0xf]
      %v1650 = vpack.c.bf16 %v1626, %v1625
      %v1651 = vpack.c.bf16 %v1628, %v1627
      %v1652 = vpack.c.bf16 %v1630, %v1629
      %v1653 = vpack.c.bf16 %v1632, %v1631
      %v1670 = vunpack.c.l.b16 %v1634
      %v1671 = vunpack.c.l.b16 %v1635
      %v1672 = vunpack.c.l.b16 %v1636
      %v1673 = vunpack.c.l.b16 %v1637
      %v1674 = vunpack.c.l.b16 %v1638
      %v1675 = vunpack.c.l.b16 %v1639
      %v1676 = vunpack.c.l.b16 %v1640
      %v1677 = vunpack.c.l.b16 %v1641
      %v1678 = vunpack.c.l.b16 %v1642
      %v1679 = vunpack.c.l.b16 %v1643
      %v1680 = vunpack.c.l.b16 %v1644
      %v1681 = vunpack.c.l.b16 %v1645
      %v1682 = vunpack.c.l.b16 %v1646
      %v1683 = vunpack.c.l.b16 %v1647
      %v1684 = vunpack.c.l.b16 %v1648
      %v1685 = vunpack.c.l.b16 %v1649
      %v1686 = vpack.c.b16 %v1671, %v1670
      %v1687 = vpack.c.b16 %v1673, %v1672
      %v1688 = vpack.c.b16 %v1675, %v1674
      %v1689 = vpack.c.b16 %v1677, %v1676
      %v1690 = vpack.c.b16 %v1679, %v1678
      %v1691 = vpack.c.b16 %v1681, %v1680
      %v1692 = vpack.c.b16 %v1683, %v1682
      %v1693 = vpack.c.b16 %v1685, %v1684
      %1702 = vmatpush.bf16.msra.mxu0 %v1693
      %1703 = vmatpush.bf16.msra.mxu0 %v1692
      %1704 = vmatpush.bf16.msra.mxu0 %v1691
      %1705 = vmatpush.bf16.msra.mxu0 %v1690
      %1706 = vmatpush.bf16.msra.mxu0 %v1689
      %1707 = vmatpush.bf16.msra.mxu0 %v1688
      %1708 = vmatpush.bf16.msra.mxu0 %v1687
      %1709 = vmatpush.bf16.msra.mxu0 %v1686
      %1710 = vmatmul.bf16.gmra.mxu0 %v1650
      %v1711 = vpop.f32.mrf.mxu0
      %v1712 = vadd.f32 0.0, %v1711
      %v1713 = vpop.f32.mrf.mxu0
      %v1714 = vadd.f32 0.0, %v1713
      %1715 = vmatmul.bf16.gmra.mxu0 %v1651
      %v1716 = vpop.f32.mrf.mxu0
      %v1717 = vadd.f32 0.0, %v1716
      %v1718 = vpop.f32.mrf.mxu0
      %v1719 = vadd.f32 0.0, %v1718
      %1720 = vmatmul.bf16.gmra.mxu0 %v1652
      %v1721 = vpop.f32.mrf.mxu0
      %v1722 = vadd.f32 0.0, %v1721
      %v1723 = vpop.f32.mrf.mxu0
      %v1724 = vadd.f32 0.0, %v1723
      %1725 = vmatmul.bf16.gmra.mxu0 %v1653
      %v1726 = vpop.f32.mrf.mxu0
      %v1727 = vadd.f32 0.0, %v1726
      %v1728 = vpop.f32.mrf.mxu0
      %v1729 = vadd.f32 0.0, %v1728
      %1730 = vdwg.mxu0
      %1731 = vst [vmem:[%s170] sm:$0xff] %v1712
      %1732 = vst [vmem:[%s170 + $0x8] sm:$0xff] %v1714
      %1733 = vst [vmem:[%s170 + $0x10] sm:$0xff] %v1717
      %1734 = vst [vmem:[%s170 + $0x18] sm:$0xff] %v1719
      %1735 = vst [vmem:[%s170 + $0x20] sm:$0xff] %v1722
      %1736 = vst [vmem:[%s170 + $0x28] sm:$0xff] %v1724
      %1737 = vst [vmem:[%s170 + $0x30] sm:$0xff] %v1727
      %1738 = vst [vmem:[%s170 + $0x38] sm:$0xff] %v1729
      %p1739 = scmp.lt.s32.totalorder %s14, 1
      %s1740 = scalar_select %p1739, %s14, 1
      %s1741 = smul.addr %s1740, 8
      %s1742 = smul.addr %s1741, 8
      %s1743 = scalar_lea.vmem %s3, %s1742
      // Predicated region
      $region33: #{forward_pallas.1} parent=31 // pred_check
        %p1744 = pneg %p100
      $region34: #{forward_pallas.1} parent=31 // pred_check_branch
        %1746 = sbr.rel (%p1744) target = $region36
      $region35: #{forward_pallas.1} parent=31 // pred_region
        _
      $region36: #{forward_pallas.1} parent=31 // pred_fallthru
        _
    $region32: #{forward_pallas.1} parent=5 // pred_fallthru
      _
    %p1747 = scmp.le.s32.totalorder 2, %s9
    // Predicated region
    $region37: #{forward_pallas.1} parent=5 // pred_check
      %p1748 = pneg %p1747
    $region38: #{forward_pallas.1} parent=5 // pred_check_branch
      %1750 = sbr.rel (%p1748) target = $region40
    $region39: #{forward_pallas.1} parent=5 // pred_region
      %s1751 = ssub.s32 %s9, 2
      // Predicated region
      $region41: #{forward_pallas.1} parent=39 // pred_check
        %p1752 = pneg %p106
      $region42: #{forward_pallas.1} parent=39 // pred_check_branch
        %1754 = sbr.rel (%p1752) target = $region44
      $region43: #{forward_pallas.1} parent=39 // pred_region
        %p1755 = scmp.lt.s32.totalorder %s15, 1
        %s1756 = scalar_select %p1755, %s15, 1
        %s1757 = smul.addr %s1756, 8
        %s1758 = smul.addr %s1757, 8
        %s1759 = scalar_lea.vmem %s3, %s1758
      $region44: #{forward_pallas.1} parent=39 // pred_fallthru
        _
    $region40: #{forward_pallas.1} parent=5 // pred_fallthru
      _
  $region6: #{forward_pallas.1} parent=0 // loop_footer
    %s13 = sadd.s32 1, %s9
  $region7: #{forward_pallas.1} parent=0 // loop_footer_branch
    %8 = sbr.rel target = $region3
  $region8: #{forward_pallas.1} parent=0 // loop_exit
    _

</llo_original>
